<compile_context>
chip_gen: v7x
topology: tpu7x:2x2x1
jax: 0.10.0
libtpu: 0.0.40
codegen_flags: <defaults>
</compile_context>

<pallas_src>
import functools

import jax
import jax.numpy as jnp
from jax import lax
from jax.experimental import pallas as pl
from jax.experimental.pallas import tpu as pltpu


def _space_to_depth_kernel(x_ref, o_ref, *, bs: int):
    """Per-(batch, row-tile) space-to-depth shuffle.

    x_ref: (C, TH', bs*W)      -- view of the NCHW input; lane index
                                  q = i*W + w holds x[c, h'*bs + i, w].
    o_ref: (bs*bs*C, TH', W')  -- NCHW output tile; channel k = (i*bs+j)*C + c
                                  must hold x[c, h'*bs + i, w'*bs + j].

    The lane gather (q = i*W + w'*bs + j  ->  w') is done as a matmul with a
    constant one-hot selector, so it runs on the (otherwise idle) MXU and the
    body contains no strided/masked vector loads and no XLU relayouts.
    """
    C, TH, BW = x_ref.shape
    W = BW // bs           # original image width
    WP = W // bs           # output width
    x2 = x_ref[...].reshape(C * TH, BW)

    q = lax.broadcasted_iota(jnp.int32, (BW, WP), 0)    # input lane index
    wp = lax.broadcasted_iota(jnp.int32, (BW, WP), 1)   # output lane index

    for i in range(bs):
        for j in range(bs):
            # One-hot selector: output lane w' takes input lane i*W + w'*bs + j.
            sel = (q == i * W + wp * bs + j).astype(x2.dtype)
            y = jnp.dot(x2, sel,
                        precision=lax.Precision.HIGHEST,
                        preferred_element_type=jnp.float32)
            k = i * bs + j
            o_ref[k * C:(k + 1) * C, :, :] = (
                y.reshape(C, TH, WP).astype(o_ref.dtype))


def _pick_row_tile(hp: int, row_bytes: int,
                   target_bytes: int = 4 * 1024 * 1024) -> int:
    """Largest divisor of hp that is a multiple of 8 (or hp itself) whose
    block stays under the per-buffer VMEM budget; else the smallest valid."""
    cands = [d for d in range(1, hp + 1)
             if hp % d == 0 and (d % 8 == 0 or d == hp)]
    fitting = [d for d in cands if d * row_bytes <= target_bytes]
    return max(fitting) if fitting else min(cands)


def space_to_depth(inputs: dict, block_size: int):
    """Matches SpaceToDepth(block_size).forward({'x': x}) with x in NCHW."""
    x = inputs["x"]
    N, C, H, W = x.shape
    bs = block_size
    assert H % bs == 0 and W % bs == 0, "H and W must be divisible by block_size"
    HP, WP = H // bs, W // bs

    # Free, row-major-identical view (no copy, no transpose): last-dim index is
    # q = i*W + w where the original row is h = h'*bs + i.
    x_v = x.reshape(N, C, HP, bs * W)

    itemsize = jnp.dtype(x.dtype).itemsize
    row_bytes = C * bs * W * itemsize            # bytes per output-row of a block
    TH = _pick_row_tile(HP, row_bytes)

    kernel = functools.partial(_space_to_depth_kernel, bs=bs)

    out = pl.pallas_call(
        kernel,
        out_shape=jax.ShapeDtypeStruct((N, bs * bs * C, HP, WP), x.dtype),
        grid_spec=pltpu.PrefetchScalarGridSpec(
            num_scalar_prefetch=0,
            grid=(N, HP // TH),
            in_specs=[
                pl.BlockSpec((None, C, TH, bs * W), lambda n, h: (n, 0, h, 0)),
            ],
            out_specs=pl.BlockSpec(
                (None, bs * bs * C, TH, WP), lambda n, h: (n, 0, h, 0)),
        ),
        compiler_params=pltpu.CompilerParams(
            dimension_semantics=("parallel", "parallel"),
            vmem_limit_bytes=48 * 1024 * 1024,
        ),
    )(x_v)
    return out


def _reference_space_to_depth(x, bs):
    """Pure-JAX replica of the PyTorch SpaceToDepth.forward (NCHW)."""
    N, C, H, W = x.shape
    r = x.reshape(N, C, H // bs, bs, W // bs, bs)
    r = jnp.transpose(r, (0, 3, 5, 1, 2, 4))
    return r.reshape(N, C * bs * bs, H // bs, W // bs)


if __name__ == "__main__":
    key = jax.random.PRNGKey(0)
    N, C, H, W = 2, 4, 16, 16
    block_size = 2

    x = jax.random.normal(key, (N, C, H, W), dtype=jnp.float32)

    out = space_to_depth({"x": x}, block_size)
    out = jax.block_until_ready(out)

    ref = _reference_space_to_depth(x, block_size)
    assert out.shape == ref.shape, (out.shape, ref.shape)
    assert bool(jnp.allclose(out, ref, rtol=1e-6, atol=1e-6)), "mismatch vs reference"

    print("KERNEL_OK")
</pallas_src>

<mosaic_0001>
module attributes {stable_mosaic.version = 11 : i64} {
  func.func @_space_to_depth_kernel(%arg0: i32, %arg1: i32, %arg2: memref<1x4x8x32xf32, #tpu.memory_space<vmem>>, %arg3: memref<1x16x8x8xf32, #tpu.memory_space<vmem>>) attributes {dimension_semantics = [#tpu.dimension_semantics<parallel>, #tpu.dimension_semantics<parallel>], iteration_bounds = array<i64: 2, 1>, scalar_prefetch = 0 : i64, scratch_operands = 0 : i64, tpu.core_type = #tpu.core_type<tc>, window_params = [{transform_indices = @transform_0, window_bounds = array<i64: 1, 4, 8, 32>}, {transform_indices = @transform_1, window_bounds = array<i64: 1, 16, 8, 8>}]} {
    %c0 = arith.constant 0 : index
    %c0_0 = arith.constant 0 : index
    %c0_1 = arith.constant 0 : index
    %c0_2 = arith.constant 0 : index
    %0 = vector.load %arg2[%c0, %c0_0, %c0_1, %c0_2] : memref<1x4x8x32xf32, #tpu.memory_space<vmem>>, vector<1x4x8x32xf32>
    %1 = vector.shape_cast %0 : vector<1x4x8x32xf32> to vector<4x8x32xf32>
    %2 = vector.shape_cast %1 : vector<4x8x32xf32> to vector<32x32xf32>
    %3 = tpu.iota {dimensions = array<i32: 0>} : vector<32x8xi32>
    %4 = tpu.iota {dimensions = array<i32: 1>} : vector<32x8xi32>
    %c2_i32 = arith.constant 2 : i32
    %5 = vector.broadcast %c2_i32 : i32 to vector<32x8xi32>
    %6 = arith.muli %4, %5 : vector<32x8xi32>
    %c0_i32 = arith.constant 0 : i32
    %7 = vector.broadcast %c0_i32 : i32 to vector<32x8xi32>
    %8 = arith.addi %7, %6 : vector<32x8xi32>
    %c0_i32_3 = arith.constant 0 : i32
    %9 = vector.broadcast %c0_i32_3 : i32 to vector<32x8xi32>
    %10 = arith.addi %8, %9 : vector<32x8xi32>
    %11 = arith.cmpi eq, %3, %10 : vector<32x8xi32>
    %12 = arith.extui %11 : vector<32x8xi1> to vector<32x8xi32>
    %13 = arith.sitofp %12 : vector<32x8xi32> to vector<32x8xf32>
    %cst = arith.constant dense<0.000000e+00> : vector<32x8xf32>
    %14 = tpu.matmul %2, %13, %cst {dimension_numbers = #tpu.dot_dimension_numbers<[1], [0], [0], [1], [0, 0, 1, 1], [], []>, precision = #tpu.contract_precision<fp32>} : vector<32x32xf32>, vector<32x8xf32>, vector<32x8xf32> -> vector<32x8xf32>
    %15 = vector.shape_cast %14 : vector<32x8xf32> to vector<4x8x8xf32>
    %c0_4 = arith.constant 0 : index
    %c0_5 = arith.constant 0 : index
    %c0_6 = arith.constant 0 : index
    %c0_7 = arith.constant 0 : index
    %16 = vector.load %arg3[%c0_4, %c0_5, %c0_6, %c0_7] : memref<1x16x8x8xf32, #tpu.memory_space<vmem>>, vector<1x4x8x8xf32>
    %17 = vector.shape_cast %16 : vector<1x4x8x8xf32> to vector<4x8x8xf32>
    %18 = vector.shape_cast %15 : vector<4x8x8xf32> to vector<1x4x8x8xf32>
    tpu.vector_store %arg3[%c0_4, %c0_5, %c0_6, %c0_7], %18 {strides = array<i32>} : memref<1x16x8x8xf32, #tpu.memory_space<vmem>>, vector<1x4x8x8xf32>,
    %c2_i32_8 = arith.constant 2 : i32
    %19 = vector.broadcast %c2_i32_8 : i32 to vector<32x8xi32>
    %20 = arith.muli %4, %19 : vector<32x8xi32>
    %c0_i32_9 = arith.constant 0 : i32
    %21 = vector.broadcast %c0_i32_9 : i32 to vector<32x8xi32>
    %22 = arith.addi %21, %20 : vector<32x8xi32>
    %c1_i32 = arith.constant 1 : i32
    %23 = vector.broadcast %c1_i32 : i32 to vector<32x8xi32>
    %24 = arith.addi %22, %23 : vector<32x8xi32>
    %25 = arith.cmpi eq, %3, %24 : vector<32x8xi32>
    %26 = arith.extui %25 : vector<32x8xi1> to vector<32x8xi32>
    %27 = arith.sitofp %26 : vector<32x8xi32> to vector<32x8xf32>
    %cst_10 = arith.constant dense<0.000000e+00> : vector<32x8xf32>
    %28 = tpu.matmul %2, %27, %cst_10 {dimension_numbers = #tpu.dot_dimension_numbers<[1], [0], [0], [1], [0, 0, 1, 1], [], []>, precision = #tpu.contract_precision<fp32>} : vector<32x32xf32>, vector<32x8xf32>, vector<32x8xf32> -> vector<32x8xf32>
    %29 = vector.shape_cast %28 : vector<32x8xf32> to vector<4x8x8xf32>
    %c0_11 = arith.constant 0 : index
    %c4 = arith.constant 4 : index
    %c0_12 = arith.constant 0 : index
    %c0_13 = arith.constant 0 : index
    %30 = vector.load %arg3[%c0_11, %c4, %c0_12, %c0_13] : memref<1x16x8x8xf32, #tpu.memory_space<vmem>>, vector<1x4x8x8xf32>
    %31 = vector.shape_cast %30 : vector<1x4x8x8xf32> to vector<4x8x8xf32>
    %32 = vector.shape_cast %29 : vector<4x8x8xf32> to vector<1x4x8x8xf32>
    tpu.vector_store %arg3[%c0_11, %c4, %c0_12, %c0_13], %32 {strides = array<i32>} : memref<1x16x8x8xf32, #tpu.memory_space<vmem>>, vector<1x4x8x8xf32>,
    %c2_i32_14 = arith.constant 2 : i32
    %33 = vector.broadcast %c2_i32_14 : i32 to vector<32x8xi32>
    %34 = arith.muli %4, %33 : vector<32x8xi32>
    %c16_i32 = arith.constant 16 : i32
    %35 = vector.broadcast %c16_i32 : i32 to vector<32x8xi32>
    %36 = arith.addi %35, %34 : vector<32x8xi32>
    %c0_i32_15 = arith.constant 0 : i32
    %37 = vector.broadcast %c0_i32_15 : i32 to vector<32x8xi32>
    %38 = arith.addi %36, %37 : vector<32x8xi32>
    %39 = arith.cmpi eq, %3, %38 : vector<32x8xi32>
    %40 = arith.extui %39 : vector<32x8xi1> to vector<32x8xi32>
    %41 = arith.sitofp %40 : vector<32x8xi32> to vector<32x8xf32>
    %cst_16 = arith.constant dense<0.000000e+00> : vector<32x8xf32>
    %42 = tpu.matmul %2, %41, %cst_16 {dimension_numbers = #tpu.dot_dimension_numbers<[1], [0], [0], [1], [0, 0, 1, 1], [], []>, precision = #tpu.contract_precision<fp32>} : vector<32x32xf32>, vector<32x8xf32>, vector<32x8xf32> -> vector<32x8xf32>
    %43 = vector.shape_cast %42 : vector<32x8xf32> to vector<4x8x8xf32>
    %c0_17 = arith.constant 0 : index
    %c8 = arith.constant 8 : index
    %c0_18 = arith.constant 0 : index
    %c0_19 = arith.constant 0 : index
    %44 = vector.load %arg3[%c0_17, %c8, %c0_18, %c0_19] : memref<1x16x8x8xf32, #tpu.memory_space<vmem>>, vector<1x4x8x8xf32>
    %45 = vector.shape_cast %44 : vector<1x4x8x8xf32> to vector<4x8x8xf32>
    %46 = vector.shape_cast %43 : vector<4x8x8xf32> to vector<1x4x8x8xf32>
    tpu.vector_store %arg3[%c0_17, %c8, %c0_18, %c0_19], %46 {strides = array<i32>} : memref<1x16x8x8xf32, #tpu.memory_space<vmem>>, vector<1x4x8x8xf32>,
    %c2_i32_20 = arith.constant 2 : i32
    %47 = vector.broadcast %c2_i32_20 : i32 to vector<32x8xi32>
    %48 = arith.muli %4, %47 : vector<32x8xi32>
    %c16_i32_21 = arith.constant 16 : i32
    %49 = vector.broadcast %c16_i32_21 : i32 to vector<32x8xi32>
    %50 = arith.addi %49, %48 : vector<32x8xi32>
    %c1_i32_22 = arith.constant 1 : i32
    %51 = vector.broadcast %c1_i32_22 : i32 to vector<32x8xi32>
    %52 = arith.addi %50, %51 : vector<32x8xi32>
    %53 = arith.cmpi eq, %3, %52 : vector<32x8xi32>
    %54 = arith.extui %53 : vector<32x8xi1> to vector<32x8xi32>
    %55 = arith.sitofp %54 : vector<32x8xi32> to vector<32x8xf32>
    %cst_23 = arith.constant dense<0.000000e+00> : vector<32x8xf32>
    %56 = tpu.matmul %2, %55, %cst_23 {dimension_numbers = #tpu.dot_dimension_numbers<[1], [0], [0], [1], [0, 0, 1, 1], [], []>, precision = #tpu.contract_precision<fp32>} : vector<32x32xf32>, vector<32x8xf32>, vector<32x8xf32> -> vector<32x8xf32>
    %57 = vector.shape_cast %56 : vector<32x8xf32> to vector<4x8x8xf32>
    %c0_24 = arith.constant 0 : index
    %c12 = arith.constant 12 : index
    %c0_25 = arith.constant 0 : index
    %c0_26 = arith.constant 0 : index
    %58 = vector.load %arg3[%c0_24, %c12, %c0_25, %c0_26] : memref<1x16x8x8xf32, #tpu.memory_space<vmem>>, vector<1x4x8x8xf32>
    %59 = vector.shape_cast %58 : vector<1x4x8x8xf32> to vector<4x8x8xf32>
    %60 = vector.shape_cast %57 : vector<4x8x8xf32> to vector<1x4x8x8xf32>
    tpu.vector_store %arg3[%c0_24, %c12, %c0_25, %c0_26], %60 {strides = array<i32>} : memref<1x16x8x8xf32, #tpu.memory_space<vmem>>, vector<1x4x8x8xf32>,
    return
  }
  func.func @transform_0(%arg0: i32, %arg1: i32) -> (i32, i32, i32, i32) {
    %c0_i32 = arith.constant 0 : i32
    %c0_i32_0 = arith.constant 0 : i32
    %c0_i32_1 = arith.constant 0 : i32
    return %arg0, %c0_i32, %arg1, %c0_i32_0 : i32, i32, i32, i32
  }
  func.func @transform_1(%arg0: i32, %arg1: i32) -> (i32, i32, i32, i32) {
    %c0_i32 = arith.constant 0 : i32
    %c0_i32_0 = arith.constant 0 : i32
    %c0_i32_1 = arith.constant 0 : i32
    return %arg0, %c0_i32, %arg1, %c0_i32_0 : i32, i32, i32, i32
  }
}

</mosaic_0001>

<llo_original>
// kernel: tpu_custom_call.1
$region0: #{tpu_custom_call.1}
  #allocation0 [shape = 'u32[]', space=smem, size = 0x4, offset = 0x4, fixed_abs, tag = 'smem constant byte address 0x4 - core index']
  #allocation1 [shape = 'u32[144,128]{1,0:T(1,128)}', space=vmem, size = 0x12000, scoped, tag = 'internal scratch']
  %s0 = inlined_call_operand.hbm [shape: f32[2,4,8,32], index: 0, kind: input, shape index: {}]
  %s1 = inlined_call_operand.vmem [shape: f32[2,16,8,8], index: 1, kind: output, shape index: {}]
  %s2 = sld [smem:[#allocation0]]
  $region41: #{tpu_custom_call.1} parent=0
    _
  %s4 = ssub.s32 1, %s2
  %s5 = scalar_select 0, %s4, %s2
  $region1: #{tpu_custom_call.1} parent=0
    #allocation2 [shape = 'u8[32768]{0}', space=vmem, size = 0x8000, scoped, tag = 'input window, operand 0']
    #allocation3 [shape = 's32[2]{0}', space=sflag, size = 0x8, scoped, tag = 'scoped memory for tpu_custom_call.1']
    %6 = vsyncpa [#allocation3], 0
    %s7 = scalar_lea.sflag [#allocation3], 1
    %8 = vsyncpa %s7, 0
    loop: start=0, step=1, limit=4
    $region2: #{tpu_custom_call.1} parent=1 // loop_pre_header
      _
    $region3: #{tpu_custom_call.1} parent=1 // loop_header
      %s10 = sphi 0, %s14
      %p11 = scmp.ge.s32.totalorder %s10, 4
      %s17 = sphi 0, %s29
      %s18 = sphi 0, %s25
      %s19 = sphi 0, %s17
      %s20 = sphi 0, %s18
      %s21 = sphi 0, %s19
      %s22 = sphi 0, %s20
      %s34 = sphi 0, %s36
      %s37 = sphi 0, %s34
      %s38 = sphi 0, %s37
      %s54 = sphi 0, %s38
      %s62 = sphi 0, %s64
      %s65 = sphi 0, %s62
      %s66 = sphi 0, %s65
      %s82 = sphi 0, %s66
    $region4: #{tpu_custom_call.1} parent=1 // loop_header_branch
      %13 = sbr.rel (%p11) target = $region8
    $region5: #{tpu_custom_call.1} parent=1 // loop_body
      %s15 = ssub.s32 %s10, 1
      %s16 = ssub.s32 %s10, 2
      %s23 = sadd.s32 1, %s18
      %p24 = scmp.ge.s32.totalorder %s23, 1
      %s25 = scalar_select %p24, 0, %s23
      %s26 = sadd.s32 1, %s17
      %s27 = scalar_select %p24, %s26, %s17
      %p28 = scmp.ge.s32.totalorder %s27, 2
      %s29 = scalar_select %p28, 0, %s27
      %s30 = ssub.s32 %s17, %s29
      %s31 = ssub.s32 %s18, %s25
      %s32 = sor.u32 %s30, %s31
      %p33 = scmp.eq.s32.totalorder %s32, 0
      %s35 = sadd.s32 %s34, 1
      %s36 = scalar_select %p33, %s34, %s35
      %p39 = pneg %p33
      %p40 = scmp.eq.s32.totalorder %s10, 1
      %p41 = por %p39, %p40
      %p42 = scmp.ne.s32.totalorder %s34, %s37
      %p43 = scmp.eq.s32.totalorder %s10, 0
      %p44 = por %p42, %p43
      %p45 = scmp.ne.s32.totalorder %s34, %s37
      %p46 = scmp.eq.s32.totalorder %s15, 1
      %p47 = por %p45, %p46
      %p48 = scmp.ne.s32.totalorder %s37, %s38
      %p49 = scmp.eq.s32.totalorder %s15, 0
      %p50 = por %p48, %p49
      %p51 = scmp.ne.s32.totalorder %s37, %s38
      %p52 = scmp.eq.s32.totalorder %s16, 1
      %p53 = por %p51, %p52
      %p55 = scmp.ne.s32.totalorder %s38, %s54
      %p56 = scmp.eq.s32.totalorder %s16, 0
      %p57 = por %p55, %p56
      %s58 = ssub.s32 %s17, %s29
      %s59 = ssub.s32 %s18, %s25
      %s60 = sor.u32 %s58, %s59
      %p61 = scmp.eq.s32.totalorder %s60, 0
      %s63 = sadd.s32 %s62, 1
      %s64 = scalar_select %p61, %s62, %s63
      %p67 = pneg %p61
      %p68 = scmp.eq.s32.totalorder %s10, 1
      %p69 = por %p67, %p68
      %p70 = scmp.ne.s32.totalorder %s62, %s65
      %p71 = scmp.eq.s32.totalorder %s10, 0
      %p72 = por %p70, %p71
      %p73 = scmp.ne.s32.totalorder %s62, %s65
      %p74 = scmp.eq.s32.totalorder %s15, 1
      %p75 = por %p73, %p74
      %p76 = scmp.ne.s32.totalorder %s65, %s66
      %p77 = scmp.eq.s32.totalorder %s15, 0
      %p78 = por %p76, %p77
      %p79 = scmp.ne.s32.totalorder %s65, %s66
      %p80 = scmp.eq.s32.totalorder %s16, 1
      %p81 = por %p79, %p80
      %p83 = scmp.ne.s32.totalorder %s66, %s82
      %p84 = scmp.eq.s32.totalorder %s16, 0
      %p85 = por %p83, %p84
      %p86 = scmp.le.s32.totalorder 1, %s10
      %p87 = scmp.lt.s32.totalorder %s10, 3
      %p88 = pnand %p86, %p87
      %p89 = pneg %p88
      // Predicated region
      $region9: #{tpu_custom_call.1} parent=5 // pred_check
        _
      $region10: #{tpu_custom_call.1} parent=5 // pred_check_branch
        %91 = sbr.rel (%p88) target = $region12
      $region11: #{tpu_custom_call.1} parent=5 // pred_region
        %s92 = ssub.s32 %s10, 1
      $region12: #{tpu_custom_call.1} parent=5 // pred_fallthru
        _
      %p93 = scmp.lt.s32.totalorder %s10, 2
      // Predicated region
      $region13: #{tpu_custom_call.1} parent=5 // pred_check
        %p94 = pneg %p93
      $region14: #{tpu_custom_call.1} parent=5 // pred_check_branch
        %96 = sbr.rel (%p94) target = $region16
      $region15: #{tpu_custom_call.1} parent=5 // pred_region
        // Predicated region
        $region17: #{tpu_custom_call.1} parent=15 // pred_check
          %p97 = pneg %p44
        $region18: #{tpu_custom_call.1} parent=15 // pred_check_branch
          %99 = sbr.rel (%p97) target = $region20
        $region19: #{tpu_custom_call.1} parent=15 // pred_region
          %s100 = sand.u32 %s34, 1
          %s101 = scalar_lea.sflag [#allocation3], %s100
          %s102 = sand.u32 %s34, 1
          %s103 = smul.addr %s102, 32
          %s104 = scalar_lea.vmem [#allocation2], %s103
          %s106 = ssub.s32 512, 512
          %107 = vsyncadd %s101, %s106
          %s108 = smul.addr %s17, 4
          %s109 = sadd.s32 %s18, %s108
          %s110 = smul.addr %s109, 128
          %s111 = scalar_lea.hbm %s0, %s110
          %s112 = sshll.u32 %s104, 4
          %s113 = int_to_ptr.vmem [resolvable:$true] %s112
          %118 = dma.hbm_to_vmem [thread:$0]  %s111, 512, %s113, %s101, 128, 128, 8
        $region20: #{tpu_custom_call.1} parent=15 // pred_fallthru
          _
      $region16: #{tpu_custom_call.1} parent=5 // pred_fallthru
        _
      %p119 = scmp.le.s32.totalorder 1, %s10
      %p120 = scmp.lt.s32.totalorder %s10, 3
      %p121 = pnand %p119, %p120
      %p122 = pneg %p121
      // Predicated region
      $region21: #{tpu_custom_call.1} parent=5 // pred_check
        _
      $region22: #{tpu_custom_call.1} parent=5 // pred_check_branch
        %124 = sbr.rel (%p121) target = $region24
      $region23: #{tpu_custom_call.1} parent=5 // pred_region
        %s125 = ssub.s32 %s10, 1
        %s126 = sand.u32 %s37, 1
        %s127 = scalar_lea.sflag [#allocation3], %s126
        %s128 = sand.u32 %s37, 1
        %s129 = smul.addr %s128, 32
        %s130 = scalar_lea.vmem [#allocation2], %s129
        // Predicated region
        $region25: #{tpu_custom_call.1} parent=23 // pred_check
          %p131 = pneg %p50
        $region26: #{tpu_custom_call.1} parent=23 // pred_check_branch
          %133 = sbr.rel (%p131) target = $region28
        $region27: #{tpu_custom_call.1} parent=23 // pred_region
          %134 = dma.done %s127, 512
        $region28: #{tpu_custom_call.1} parent=23 // pred_fallthru
          _
        %s135 = sand.u32 %s37, 1
        %s136 = scalar_lea.sflag [#allocation3], %s135
        %s137 = sand.u32 %s37, 1
        %s138 = smul.addr %s137, 32
        %s139 = scalar_lea.vmem [#allocation2], %s138
        %p140 = pneg %p50
        %p141 = pneg %p47
        %p142 = pneg %p78
        %p143 = pneg %p75
        %p144 = scmp.lt.s32.totalorder %s19, 1
        %s145 = scalar_select %p144, %s19, 1
        %p146 = scmp.lt.s32.totalorder %s20, 0
        %s147 = scalar_select %p146, %s20, 0
        %s148 = smul.addr %s145, 16
        %s149 = sadd.s32 %s147, %s148
        %s150 = smul.addr %s149, 8
        %s151 = scalar_lea.vmem %s1, %s150
        %p152 = scmp.lt.s32.totalorder %s19, 1
        %s153 = scalar_select %p152, %s19, 1
        %p154 = scmp.lt.s32.totalorder %s20, 0
        %s155 = scalar_select %p154, %s20, 0
        %s156 = smul.addr %s153, 16
        %s157 = sadd.s32 %s155, %s156
        %s158 = smul.addr %s157, 8
        %s159 = scalar_lea.vmem %s1, %s158
        %v160 = vld [vmem:[%s130] sm:$0xff]
        %v161 = vld [vmem:[%s130 + $0x8] sm:$0xff]
        %v162 = vld [vmem:[%s130 + $0x10] sm:$0xff]
        %v163 = vld [vmem:[%s130 + $0x18] sm:$0xff]
        %v164 = vlaneseq
        %v165 = vshrl.u32 %v164, 7
        %v166 = vadd.s32 %v165, 8
        %v167 = vadd.s32 %v165, 16
        %v168 = vadd.s32 %v165, 24
        %v169 = vlaneseq
        %v170 = vand.u32 %v169, 127
        %v171 = vmul.u32 %v170, 2
        %vm172 = vcmp.eq.s32.totalorder %v165, %v171
        %vm173 = vcmp.eq.s32.totalorder %v166, %v171
        %vm174 = vcmp.eq.s32.totalorder %v167, %v171
        %vm175 = vcmp.eq.s32.totalorder %v168, %v171
        %v176 = vsel %vm172, 1, 0
        %v177 = vsel %vm173, 1, 0
        %v178 = vsel %vm174, 1, 0
        %v179 = vsel %vm175, 1, 0
        %v180 = vcvt.s32.f32 %v176
        %v181 = vcvt.s32.f32 %v177
        %v182 = vcvt.s32.f32 %v178
        %v183 = vcvt.s32.f32 %v179
        %vm184 = vcmask 261120
        %v186 = vsel %vm184, %v160, 0
        %v189 = vsel %vm184, %v161, 0
        %v192 = vsel %vm184, %v162, 0
        %v195 = vsel %vm184, %v163, 0
        %197 = vmatprep.subr.mxu0 0.0
        %v198 = vand.u32 %v180, 4294901760
        %199 = vmatpush1.msra.mxu0 %v198
        %200 = vmatprep.subr.mxu0 0.0
        %v201 = vand.u32 %v181, 4294901760
        %202 = vmatpush1.msra.mxu0 %v201
        %203 = vmatprep.subr.mxu0 0.0
        %v204 = vand.u32 %v182, 4294901760
        %205 = vmatpush1.msra.mxu0 %v204
        %206 = vmatprep.subr.mxu0 0.0
        %v207 = vand.u32 %v183, 4294901760
        %208 = vmatpush1.msra.mxu0 %v207
        %209 = vmatprep.subr.mxu0 0.0
        %210 = vmatpush1.msra.mxu0 0.0
        %211 = vmatprep.subr.mxu0 0.0
        %212 = vmatpush1.msra.mxu0 0.0
        %213 = vmatprep.subr.mxu0 0.0
        %214 = vmatpush1.msra.mxu0 0.0
        %215 = vmatprep.subr.mxu0 0.0
        %216 = vmatpush1.msra.mxu0 0.0
        %217 = vmatprep.subr.mxu0 0.0
        %218 = vmatpush1.msra.mxu0 0.0
        %219 = vmatprep.subr.mxu0 0.0
        %220 = vmatpush1.msra.mxu0 0.0
        %221 = vmatprep.subr.mxu0 0.0
        %222 = vmatpush1.msra.mxu0 0.0
        %223 = vmatprep.subr.mxu0 0.0
        %224 = vmatpush1.msra.mxu0 0.0
        %225 = vmatprep.subr.mxu0 0.0
        %226 = vmatpush1.msra.mxu0 0.0
        %227 = vmatprep.subr.mxu0 0.0
        %228 = vmatpush1.msra.mxu0 0.0
        %229 = vmatprep.subr.mxu0 0.0
        %230 = vmatpush1.msra.mxu0 0.0
        %231 = vmatprep.subr.mxu0 0.0
        %232 = vmatpush1.msra.mxu0 0.0
        %233 = vmatprep.subr.mxu0 0.0
        %234 = vmatpush1.msra.mxu0 0.0
        %235 = vmatprep.subr.mxu0 0.0
        %236 = vmatpush1.msra.mxu0 0.0
        %237 = vmatprep.subr.mxu0 0.0
        %238 = vmatpush1.msra.mxu0 0.0
        %239 = vmatprep.subr.mxu0 0.0
        %240 = vmatpush1.msra.mxu0 0.0
        %241 = vmatprep.subr.mxu0 0.0
        %242 = vmatpush1.msra.mxu0 0.0
        %243 = vmatprep.subr.mxu0 0.0
        %244 = vmatpush1.msra.mxu0 0.0
        %245 = vmatprep.subr.mxu0 0.0
        %246 = vmatpush1.msra.mxu0 0.0
        %247 = vmatprep.subr.mxu0 0.0
        %248 = vmatpush1.msra.mxu0 0.0
        %249 = vmatprep.subr.mxu0 0.0
        %250 = vmatpush1.msra.mxu0 0.0
        %251 = vmatprep.subr.mxu0 0.0
        %252 = vmatpush1.msra.mxu0 0.0
        %253 = vmatprep.subr.mxu0 0.0
        %254 = vmatpush1.msra.mxu0 0.0
        %255 = vmatprep.subr.mxu0 0.0
        %256 = vmatpush1.msra.mxu0 0.0
        %257 = vmatprep.subr.mxu0 0.0
        %258 = vmatpush1.msra.mxu0 0.0
        %259 = vmatprep.subr.mxu0 0.0
        %260 = vmatpush1.msra.mxu0 0.0
        %261 = vmatprep.subr.mxu0 0.0
        %262 = vmatpush1.msra.mxu0 0.0
        %263 = vmatprep.subr.mxu0 0.0
        %264 = vmatpush1.msra.mxu0 0.0
        %265 = vmatprep.mubr.f32.mxu0 0.0
        %v266 = vand.u32 %v186, 4294901760
        %v267 = vsub.f32 %v186, %v266
        %v268 = vand.u32 %v267, 4294901760
        %v269 = vsub.f32 %v267, %v268
        %v270 = vand.u32 %v269, 4294901760
        %271 = vmatmul.mubr.f32.gmra.mrb[0].mxu0 %v270
        %v272 = vpop.f32.mrb[0].mxu0
        %v273 = vadd.f32 0.0, %v272
        %v274 = vpop.f32.mrb[0].mxu0
        %275 = vmatprep.mubr.f32.mxu0 0.0
        %v276 = vand.u32 %v189, 4294901760
        %v277 = vsub.f32 %v189, %v276
        %v278 = vand.u32 %v277, 4294901760
        %v279 = vsub.f32 %v277, %v278
        %v280 = vand.u32 %v279, 4294901760
        %281 = vmatmul.mubr.f32.gmra.mrb[0].mxu0 %v280
        %v282 = vpop.f32.mrb[0].mxu0
        %v283 = vadd.f32 0.0, %v282
        %v284 = vpop.f32.mrb[0].mxu0
        %285 = vmatprep.mubr.f32.mxu0 0.0
        %v286 = vand.u32 %v192, 4294901760
        %v287 = vsub.f32 %v192, %v286
        %v288 = vand.u32 %v287, 4294901760
        %v289 = vsub.f32 %v287, %v288
        %v290 = vand.u32 %v289, 4294901760
        %291 = vmatmul.mubr.f32.gmra.mrb[0].mxu0 %v290
        %v292 = vpop.f32.mrb[0].mxu0
        %v293 = vadd.f32 0.0, %v292
        %v294 = vpop.f32.mrb[0].mxu0
        %295 = vmatprep.mubr.f32.mxu0 0.0
        %v296 = vand.u32 %v195, 4294901760
        %v297 = vsub.f32 %v195, %v296
        %v298 = vand.u32 %v297, 4294901760
        %v299 = vsub.f32 %v297, %v298
        %v300 = vand.u32 %v299, 4294901760
        %301 = vmatmul.mubr.f32.gmra.mrb[0].mxu0 %v300
        %v302 = vpop.f32.mrb[0].mxu0
        %v303 = vadd.f32 0.0, %v302
        %v304 = vpop.f32.mrb[0].mxu0
        %305 = vdwg.mxu0
        %306 = vmatprep.subr.mxu0 0.0
        %v307 = vand.u32 %v180, 4294901760
        %v308 = vsub.f32 %v180, %v307
        %v309 = vand.u32 %v308, 4294901760
        %v310 = vsub.f32 %v308, %v309
        %v311 = vand.u32 %v310, 4294901760
        %312 = vmatpush1.msra.mxu0 %v311
        %313 = vmatprep.subr.mxu0 0.0
        %v314 = vand.u32 %v181, 4294901760
        %v315 = vsub.f32 %v181, %v314
        %v316 = vand.u32 %v315, 4294901760
        %v317 = vsub.f32 %v315, %v316
        %v318 = vand.u32 %v317, 4294901760
        %319 = vmatpush1.msra.mxu0 %v318
        %320 = vmatprep.subr.mxu0 0.0
        %v321 = vand.u32 %v182, 4294901760
        %v322 = vsub.f32 %v182, %v321
        %v323 = vand.u32 %v322, 4294901760
        %v324 = vsub.f32 %v322, %v323
        %v325 = vand.u32 %v324, 4294901760
        %326 = vmatpush1.msra.mxu0 %v325
        %327 = vmatprep.subr.mxu0 0.0
        %v328 = vand.u32 %v183, 4294901760
        %v329 = vsub.f32 %v183, %v328
        %v330 = vand.u32 %v329, 4294901760
        %v331 = vsub.f32 %v329, %v330
        %v332 = vand.u32 %v331, 4294901760
        %333 = vmatpush1.msra.mxu0 %v332
        %334 = vmatprep.subr.mxu0 0.0
        %335 = vmatpush1.msra.mxu0 0.0
        %336 = vmatprep.subr.mxu0 0.0
        %337 = vmatpush1.msra.mxu0 0.0
        %338 = vmatprep.subr.mxu0 0.0
        %339 = vmatpush1.msra.mxu0 0.0
        %340 = vmatprep.subr.mxu0 0.0
        %341 = vmatpush1.msra.mxu0 0.0
        %342 = vmatprep.subr.mxu0 0.0
        %343 = vmatpush1.msra.mxu0 0.0
        %344 = vmatprep.subr.mxu0 0.0
        %345 = vmatpush1.msra.mxu0 0.0
        %346 = vmatprep.subr.mxu0 0.0
        %347 = vmatpush1.msra.mxu0 0.0
        %348 = vmatprep.subr.mxu0 0.0
        %349 = vmatpush1.msra.mxu0 0.0
        %350 = vmatprep.subr.mxu0 0.0
        %351 = vmatpush1.msra.mxu0 0.0
        %352 = vmatprep.subr.mxu0 0.0
        %353 = vmatpush1.msra.mxu0 0.0
        %354 = vmatprep.subr.mxu0 0.0
        %355 = vmatpush1.msra.mxu0 0.0
        %356 = vmatprep.subr.mxu0 0.0
        %357 = vmatpush1.msra.mxu0 0.0
        %358 = vmatprep.subr.mxu0 0.0
        %359 = vmatpush1.msra.mxu0 0.0
        %360 = vmatprep.subr.mxu0 0.0
        %361 = vmatpush1.msra.mxu0 0.0
        %362 = vmatprep.subr.mxu0 0.0
        %363 = vmatpush1.msra.mxu0 0.0
        %364 = vmatprep.subr.mxu0 0.0
        %365 = vmatpush1.msra.mxu0 0.0
        %366 = vmatprep.subr.mxu0 0.0
        %367 = vmatpush1.msra.mxu0 0.0
        %368 = vmatprep.subr.mxu0 0.0
        %369 = vmatpush1.msra.mxu0 0.0
        %370 = vmatprep.subr.mxu0 0.0
        %371 = vmatpush1.msra.mxu0 0.0
        %372 = vmatprep.subr.mxu0 0.0
        %373 = vmatpush1.msra.mxu0 0.0
        %374 = vmatprep.subr.mxu0 0.0
        %375 = vmatpush1.msra.mxu0 0.0
        %376 = vmatprep.subr.mxu0 0.0
        %377 = vmatpush1.msra.mxu0 0.0
        %378 = vmatprep.subr.mxu0 0.0
        %379 = vmatpush1.msra.mxu0 0.0
        %380 = vmatprep.subr.mxu0 0.0
        %381 = vmatpush1.msra.mxu0 0.0
        %382 = vmatprep.subr.mxu0 0.0
        %383 = vmatpush1.msra.mxu0 0.0
        %384 = vmatprep.subr.mxu0 0.0
        %385 = vmatpush1.msra.mxu0 0.0
        %386 = vmatprep.subr.mxu0 0.0
        %387 = vmatpush1.msra.mxu0 0.0
        %388 = vmatprep.subr.mxu0 0.0
        %389 = vmatpush1.msra.mxu0 0.0
        %390 = vmatprep.mubr.f32.mxu0 0.0
        %v391 = vand.u32 %v186, 4294901760
        %392 = vmatmul.mubr.f32.gmra.mrb[0].mxu0 %v391
        %v393 = vpop.f32.mrb[0].mxu0
        %v394 = vadd.f32 %v273, %v393
        %v395 = vpop.f32.mrb[0].mxu0
        %396 = vmatprep.mubr.f32.mxu0 0.0
        %v397 = vand.u32 %v189, 4294901760
        %398 = vmatmul.mubr.f32.gmra.mrb[0].mxu0 %v397
        %v399 = vpop.f32.mrb[0].mxu0
        %v400 = vadd.f32 %v283, %v399
        %v401 = vpop.f32.mrb[0].mxu0
        %402 = vmatprep.mubr.f32.mxu0 0.0
        %v403 = vand.u32 %v192, 4294901760
        %404 = vmatmul.mubr.f32.gmra.mrb[0].mxu0 %v403
        %v405 = vpop.f32.mrb[0].mxu0
        %v406 = vadd.f32 %v293, %v405
        %v407 = vpop.f32.mrb[0].mxu0
        %408 = vmatprep.mubr.f32.mxu0 0.0
        %v409 = vand.u32 %v195, 4294901760
        %410 = vmatmul.mubr.f32.gmra.mrb[0].mxu0 %v409
        %v411 = vpop.f32.mrb[0].mxu0
        %v412 = vadd.f32 %v303, %v411
        %v413 = vpop.f32.mrb[0].mxu0
        %414 = vdwg.mxu0
        %415 = vmatprep.subr.mxu0 0.0
        %v416 = vand.u32 %v180, 4294901760
        %v417 = vsub.f32 %v180, %v416
        %418 = vmatpush1.msra.mxu0 %v417
        %419 = vmatprep.subr.mxu0 0.0
        %v420 = vand.u32 %v181, 4294901760
        %v421 = vsub.f32 %v181, %v420
        %422 = vmatpush1.msra.mxu0 %v421
        %423 = vmatprep.subr.mxu0 0.0
        %v424 = vand.u32 %v182, 4294901760
        %v425 = vsub.f32 %v182, %v424
        %426 = vmatpush1.msra.mxu0 %v425
        %427 = vmatprep.subr.mxu0 0.0
        %v428 = vand.u32 %v183, 4294901760
        %v429 = vsub.f32 %v183, %v428
        %430 = vmatpush1.msra.mxu0 %v429
        %431 = vmatprep.subr.mxu0 0.0
        %432 = vmatpush1.msra.mxu0 0.0
        %433 = vmatprep.subr.mxu0 0.0
        %434 = vmatpush1.msra.mxu0 0.0
        %435 = vmatprep.subr.mxu0 0.0
        %436 = vmatpush1.msra.mxu0 0.0
        %437 = vmatprep.subr.mxu0 0.0
        %438 = vmatpush1.msra.mxu0 0.0
        %439 = vmatprep.subr.mxu0 0.0
        %440 = vmatpush1.msra.mxu0 0.0
        %441 = vmatprep.subr.mxu0 0.0
        %442 = vmatpush1.msra.mxu0 0.0
        %443 = vmatprep.subr.mxu0 0.0
        %444 = vmatpush1.msra.mxu0 0.0
        %445 = vmatprep.subr.mxu0 0.0
        %446 = vmatpush1.msra.mxu0 0.0
        %447 = vmatprep.subr.mxu0 0.0
        %448 = vmatpush1.msra.mxu0 0.0
        %449 = vmatprep.subr.mxu0 0.0
        %450 = vmatpush1.msra.mxu0 0.0
        %451 = vmatprep.subr.mxu0 0.0
        %452 = vmatpush1.msra.mxu0 0.0
        %453 = vmatprep.subr.mxu0 0.0
        %454 = vmatpush1.msra.mxu0 0.0
        %455 = vmatprep.subr.mxu0 0.0
        %456 = vmatpush1.msra.mxu0 0.0
        %457 = vmatprep.subr.mxu0 0.0
        %458 = vmatpush1.msra.mxu0 0.0
        %459 = vmatprep.subr.mxu0 0.0
        %460 = vmatpush1.msra.mxu0 0.0
        %461 = vmatprep.subr.mxu0 0.0
        %462 = vmatpush1.msra.mxu0 0.0
        %463 = vmatprep.subr.mxu0 0.0
        %464 = vmatpush1.msra.mxu0 0.0
        %465 = vmatprep.subr.mxu0 0.0
        %466 = vmatpush1.msra.mxu0 0.0
        %467 = vmatprep.subr.mxu0 0.0
        %468 = vmatpush1.msra.mxu0 0.0
        %469 = vmatprep.subr.mxu0 0.0
        %470 = vmatpush1.msra.mxu0 0.0
        %471 = vmatprep.subr.mxu0 0.0
        %472 = vmatpush1.msra.mxu0 0.0
        %473 = vmatprep.subr.mxu0 0.0
        %474 = vmatpush1.msra.mxu0 0.0
        %475 = vmatprep.subr.mxu0 0.0
        %476 = vmatpush1.msra.mxu0 0.0
        %477 = vmatprep.subr.mxu0 0.0
        %478 = vmatpush1.msra.mxu0 0.0
        %479 = vmatprep.subr.mxu0 0.0
        %480 = vmatpush1.msra.mxu0 0.0
        %481 = vmatprep.subr.mxu0 0.0
        %482 = vmatpush1.msra.mxu0 0.0
        %483 = vmatprep.subr.mxu0 0.0
        %484 = vmatpush1.msra.mxu0 0.0
        %485 = vmatprep.subr.mxu0 0.0
        %486 = vmatpush1.msra.mxu0 0.0
        %487 = vmatprep.mubr.f32.mxu0 0.0
        %v488 = vand.u32 %v186, 4294901760
        %v489 = vsub.f32 %v186, %v488
        %490 = vmatmul.mubr.f32.gmra.mrb[0].mxu0 %v489
        %v491 = vpop.f32.mrb[0].mxu0
        %v492 = vadd.f32 %v394, %v491
        %v493 = vpop.f32.mrb[0].mxu0
        %494 = vmatprep.mubr.f32.mxu0 0.0
        %v495 = vand.u32 %v189, 4294901760
        %v496 = vsub.f32 %v189, %v495
        %497 = vmatmul.mubr.f32.gmra.mrb[0].mxu0 %v496
        %v498 = vpop.f32.mrb[0].mxu0
        %v499 = vadd.f32 %v400, %v498
        %v500 = vpop.f32.mrb[0].mxu0
        %501 = vmatprep.mubr.f32.mxu0 0.0
        %v502 = vand.u32 %v192, 4294901760
        %v503 = vsub.f32 %v192, %v502
        %504 = vmatmul.mubr.f32.gmra.mrb[0].mxu0 %v503
        %v505 = vpop.f32.mrb[0].mxu0
        %v506 = vadd.f32 %v406, %v505
        %v507 = vpop.f32.mrb[0].mxu0
        %508 = vmatprep.mubr.f32.mxu0 0.0
        %v509 = vand.u32 %v195, 4294901760
        %v510 = vsub.f32 %v195, %v509
        %511 = vmatmul.mubr.f32.gmra.mrb[0].mxu0 %v510
        %v512 = vpop.f32.mrb[0].mxu0
        %v513 = vadd.f32 %v412, %v512
        %v514 = vpop.f32.mrb[0].mxu0
        %515 = vdwg.mxu0
        %516 = vmatprep.subr.mxu0 0.0
        %v517 = vand.u32 %v180, 4294901760
        %518 = vmatpush1.msra.mxu0 %v517
        %519 = vmatprep.subr.mxu0 0.0
        %v520 = vand.u32 %v181, 4294901760
        %521 = vmatpush1.msra.mxu0 %v520
        %522 = vmatprep.subr.mxu0 0.0
        %v523 = vand.u32 %v182, 4294901760
        %524 = vmatpush1.msra.mxu0 %v523
        %525 = vmatprep.subr.mxu0 0.0
        %v526 = vand.u32 %v183, 4294901760
        %527 = vmatpush1.msra.mxu0 %v526
        %528 = vmatprep.subr.mxu0 0.0
        %529 = vmatpush1.msra.mxu0 0.0
        %530 = vmatprep.subr.mxu0 0.0
        %531 = vmatpush1.msra.mxu0 0.0
        %532 = vmatprep.subr.mxu0 0.0
        %533 = vmatpush1.msra.mxu0 0.0
        %534 = vmatprep.subr.mxu0 0.0
        %535 = vmatpush1.msra.mxu0 0.0
        %536 = vmatprep.subr.mxu0 0.0
        %537 = vmatpush1.msra.mxu0 0.0
        %538 = vmatprep.subr.mxu0 0.0
        %539 = vmatpush1.msra.mxu0 0.0
        %540 = vmatprep.subr.mxu0 0.0
        %541 = vmatpush1.msra.mxu0 0.0
        %542 = vmatprep.subr.mxu0 0.0
        %543 = vmatpush1.msra.mxu0 0.0
        %544 = vmatprep.subr.mxu0 0.0
        %545 = vmatpush1.msra.mxu0 0.0
        %546 = vmatprep.subr.mxu0 0.0
        %547 = vmatpush1.msra.mxu0 0.0
        %548 = vmatprep.subr.mxu0 0.0
        %549 = vmatpush1.msra.mxu0 0.0
        %550 = vmatprep.subr.mxu0 0.0
        %551 = vmatpush1.msra.mxu0 0.0
        %552 = vmatprep.subr.mxu0 0.0
        %553 = vmatpush1.msra.mxu0 0.0
        %554 = vmatprep.subr.mxu0 0.0
        %555 = vmatpush1.msra.mxu0 0.0
        %556 = vmatprep.subr.mxu0 0.0
        %557 = vmatpush1.msra.mxu0 0.0
        %558 = vmatprep.subr.mxu0 0.0
        %559 = vmatpush1.msra.mxu0 0.0
        %560 = vmatprep.subr.mxu0 0.0
        %561 = vmatpush1.msra.mxu0 0.0
        %562 = vmatprep.subr.mxu0 0.0
        %563 = vmatpush1.msra.mxu0 0.0
        %564 = vmatprep.subr.mxu0 0.0
        %565 = vmatpush1.msra.mxu0 0.0
        %566 = vmatprep.subr.mxu0 0.0
        %567 = vmatpush1.msra.mxu0 0.0
        %568 = vmatprep.subr.mxu0 0.0
        %569 = vmatpush1.msra.mxu0 0.0
        %570 = vmatprep.subr.mxu0 0.0
        %571 = vmatpush1.msra.mxu0 0.0
        %572 = vmatprep.subr.mxu0 0.0
        %573 = vmatpush1.msra.mxu0 0.0
        %574 = vmatprep.subr.mxu0 0.0
        %575 = vmatpush1.msra.mxu0 0.0
        %576 = vmatprep.subr.mxu0 0.0
        %577 = vmatpush1.msra.mxu0 0.0
        %578 = vmatprep.subr.mxu0 0.0
        %579 = vmatpush1.msra.mxu0 0.0
        %580 = vmatprep.subr.mxu0 0.0
        %581 = vmatpush1.msra.mxu0 0.0
        %582 = vmatprep.subr.mxu0 0.0
        %583 = vmatpush1.msra.mxu0 0.0
        %584 = vmatprep.mubr.f32.mxu0 0.0
        %v585 = vand.u32 %v186, 4294901760
        %v586 = vsub.f32 %v186, %v585
        %v587 = vand.u32 %v586, 4294901760
        %588 = vmatmul.mubr.f32.gmra.mrb[0].mxu0 %v587
        %v589 = vpop.f32.mrb[0].mxu0
        %v590 = vadd.f32 %v492, %v589
        %v591 = vpop.f32.mrb[0].mxu0
        %592 = vmatprep.mubr.f32.mxu0 0.0
        %v593 = vand.u32 %v189, 4294901760
        %v594 = vsub.f32 %v189, %v593
        %v595 = vand.u32 %v594, 4294901760
        %596 = vmatmul.mubr.f32.gmra.mrb[0].mxu0 %v595
        %v597 = vpop.f32.mrb[0].mxu0
        %v598 = vadd.f32 %v499, %v597
        %v599 = vpop.f32.mrb[0].mxu0
        %600 = vmatprep.mubr.f32.mxu0 0.0
        %v601 = vand.u32 %v192, 4294901760
        %v602 = vsub.f32 %v192, %v601
        %v603 = vand.u32 %v602, 4294901760
        %604 = vmatmul.mubr.f32.gmra.mrb[0].mxu0 %v603
        %v605 = vpop.f32.mrb[0].mxu0
        %v606 = vadd.f32 %v506, %v605
        %v607 = vpop.f32.mrb[0].mxu0
        %608 = vmatprep.mubr.f32.mxu0 0.0
        %v609 = vand.u32 %v195, 4294901760
        %v610 = vsub.f32 %v195, %v609
        %v611 = vand.u32 %v610, 4294901760
        %612 = vmatmul.mubr.f32.gmra.mrb[0].mxu0 %v611
        %v613 = vpop.f32.mrb[0].mxu0
        %v614 = vadd.f32 %v513, %v613
        %v615 = vpop.f32.mrb[0].mxu0
        %616 = vdwg.mxu0
        %617 = vmatprep.subr.mxu0 0.0
        %v618 = vand.u32 %v180, 4294901760
        %v619 = vsub.f32 %v180, %v618
        %v620 = vand.u32 %v619, 4294901760
        %621 = vmatpush1.msra.mxu0 %v620
        %622 = vmatprep.subr.mxu0 0.0
        %v623 = vand.u32 %v181, 4294901760
        %v624 = vsub.f32 %v181, %v623
        %v625 = vand.u32 %v624, 4294901760
        %626 = vmatpush1.msra.mxu0 %v625
        %627 = vmatprep.subr.mxu0 0.0
        %v628 = vand.u32 %v182, 4294901760
        %v629 = vsub.f32 %v182, %v628
        %v630 = vand.u32 %v629, 4294901760
        %631 = vmatpush1.msra.mxu0 %v630
        %632 = vmatprep.subr.mxu0 0.0
        %v633 = vand.u32 %v183, 4294901760
        %v634 = vsub.f32 %v183, %v633
        %v635 = vand.u32 %v634, 4294901760
        %636 = vmatpush1.msra.mxu0 %v635
        %637 = vmatprep.subr.mxu0 0.0
        %638 = vmatpush1.msra.mxu0 0.0
        %639 = vmatprep.subr.mxu0 0.0
        %640 = vmatpush1.msra.mxu0 0.0
        %641 = vmatprep.subr.mxu0 0.0
        %642 = vmatpush1.msra.mxu0 0.0
        %643 = vmatprep.subr.mxu0 0.0
        %644 = vmatpush1.msra.mxu0 0.0
        %645 = vmatprep.subr.mxu0 0.0
        %646 = vmatpush1.msra.mxu0 0.0
        %647 = vmatprep.subr.mxu0 0.0
        %648 = vmatpush1.msra.mxu0 0.0
        %649 = vmatprep.subr.mxu0 0.0
        %650 = vmatpush1.msra.mxu0 0.0
        %651 = vmatprep.subr.mxu0 0.0
        %652 = vmatpush1.msra.mxu0 0.0
        %653 = vmatprep.subr.mxu0 0.0
        %654 = vmatpush1.msra.mxu0 0.0
        %655 = vmatprep.subr.mxu0 0.0
        %656 = vmatpush1.msra.mxu0 0.0
        %657 = vmatprep.subr.mxu0 0.0
        %658 = vmatpush1.msra.mxu0 0.0
        %659 = vmatprep.subr.mxu0 0.0
        %660 = vmatpush1.msra.mxu0 0.0
        %661 = vmatprep.subr.mxu0 0.0
        %662 = vmatpush1.msra.mxu0 0.0
        %663 = vmatprep.subr.mxu0 0.0
        %664 = vmatpush1.msra.mxu0 0.0
        %665 = vmatprep.subr.mxu0 0.0
        %666 = vmatpush1.msra.mxu0 0.0
        %667 = vmatprep.subr.mxu0 0.0
        %668 = vmatpush1.msra.mxu0 0.0
        %669 = vmatprep.subr.mxu0 0.0
        %670 = vmatpush1.msra.mxu0 0.0
        %671 = vmatprep.subr.mxu0 0.0
        %672 = vmatpush1.msra.mxu0 0.0
        %673 = vmatprep.subr.mxu0 0.0
        %674 = vmatpush1.msra.mxu0 0.0
        %675 = vmatprep.subr.mxu0 0.0
        %676 = vmatpush1.msra.mxu0 0.0
        %677 = vmatprep.subr.mxu0 0.0
        %678 = vmatpush1.msra.mxu0 0.0
        %679 = vmatprep.subr.mxu0 0.0
        %680 = vmatpush1.msra.mxu0 0.0
        %681 = vmatprep.subr.mxu0 0.0
        %682 = vmatpush1.msra.mxu0 0.0
        %683 = vmatprep.subr.mxu0 0.0
        %684 = vmatpush1.msra.mxu0 0.0
        %685 = vmatprep.subr.mxu0 0.0
        %686 = vmatpush1.msra.mxu0 0.0
        %687 = vmatprep.subr.mxu0 0.0
        %688 = vmatpush1.msra.mxu0 0.0
        %689 = vmatprep.subr.mxu0 0.0
        %690 = vmatpush1.msra.mxu0 0.0
        %691 = vmatprep.subr.mxu0 0.0
        %692 = vmatpush1.msra.mxu0 0.0
        %693 = vmatprep.mubr.f32.mxu0 0.0
        %v694 = vand.u32 %v186, 4294901760
        %695 = vmatmul.mubr.f32.gmra.mrb[0].mxu0 %v694
        %v696 = vpop.f32.mrb[0].mxu0
        %v697 = vadd.f32 %v590, %v696
        %v698 = vpop.f32.mrb[0].mxu0
        %699 = vmatprep.mubr.f32.mxu0 0.0
        %v700 = vand.u32 %v189, 4294901760
        %701 = vmatmul.mubr.f32.gmra.mrb[0].mxu0 %v700
        %v702 = vpop.f32.mrb[0].mxu0
        %v703 = vadd.f32 %v598, %v702
        %v704 = vpop.f32.mrb[0].mxu0
        %705 = vmatprep.mubr.f32.mxu0 0.0
        %v706 = vand.u32 %v192, 4294901760
        %707 = vmatmul.mubr.f32.gmra.mrb[0].mxu0 %v706
        %v708 = vpop.f32.mrb[0].mxu0
        %v709 = vadd.f32 %v606, %v708
        %v710 = vpop.f32.mrb[0].mxu0
        %711 = vmatprep.mubr.f32.mxu0 0.0
        %v712 = vand.u32 %v195, 4294901760
        %713 = vmatmul.mubr.f32.gmra.mrb[0].mxu0 %v712
        %v714 = vpop.f32.mrb[0].mxu0
        %v715 = vadd.f32 %v614, %v714
        %v716 = vpop.f32.mrb[0].mxu0
        %717 = vdwg.mxu0
        %718 = vmatprep.subr.mxu0 0.0
        %v719 = vand.u32 %v180, 4294901760
        %720 = vmatpush1.msra.mxu0 %v719
        %721 = vmatprep.subr.mxu0 0.0
        %v722 = vand.u32 %v181, 4294901760
        %723 = vmatpush1.msra.mxu0 %v722
        %724 = vmatprep.subr.mxu0 0.0
        %v725 = vand.u32 %v182, 4294901760
        %726 = vmatpush1.msra.mxu0 %v725
        %727 = vmatprep.subr.mxu0 0.0
        %v728 = vand.u32 %v183, 4294901760
        %729 = vmatpush1.msra.mxu0 %v728
        %730 = vmatprep.subr.mxu0 0.0
        %731 = vmatpush1.msra.mxu0 0.0
        %732 = vmatprep.subr.mxu0 0.0
        %733 = vmatpush1.msra.mxu0 0.0
        %734 = vmatprep.subr.mxu0 0.0
        %735 = vmatpush1.msra.mxu0 0.0
        %736 = vmatprep.subr.mxu0 0.0
        %737 = vmatpush1.msra.mxu0 0.0
        %738 = vmatprep.subr.mxu0 0.0
        %739 = vmatpush1.msra.mxu0 0.0
        %740 = vmatprep.subr.mxu0 0.0
        %741 = vmatpush1.msra.mxu0 0.0
        %742 = vmatprep.subr.mxu0 0.0
        %743 = vmatpush1.msra.mxu0 0.0
        %744 = vmatprep.subr.mxu0 0.0
        %745 = vmatpush1.msra.mxu0 0.0
        %746 = vmatprep.subr.mxu0 0.0
        %747 = vmatpush1.msra.mxu0 0.0
        %748 = vmatprep.subr.mxu0 0.0
        %749 = vmatpush1.msra.mxu0 0.0
        %750 = vmatprep.subr.mxu0 0.0
        %751 = vmatpush1.msra.mxu0 0.0
        %752 = vmatprep.subr.mxu0 0.0
        %753 = vmatpush1.msra.mxu0 0.0
        %754 = vmatprep.subr.mxu0 0.0
        %755 = vmatpush1.msra.mxu0 0.0
        %756 = vmatprep.subr.mxu0 0.0
        %757 = vmatpush1.msra.mxu0 0.0
        %758 = vmatprep.subr.mxu0 0.0
        %759 = vmatpush1.msra.mxu0 0.0
        %760 = vmatprep.subr.mxu0 0.0
        %761 = vmatpush1.msra.mxu0 0.0
        %762 = vmatprep.subr.mxu0 0.0
        %763 = vmatpush1.msra.mxu0 0.0
        %764 = vmatprep.subr.mxu0 0.0
        %765 = vmatpush1.msra.mxu0 0.0
        %766 = vmatprep.subr.mxu0 0.0
        %767 = vmatpush1.msra.mxu0 0.0
        %768 = vmatprep.subr.mxu0 0.0
        %769 = vmatpush1.msra.mxu0 0.0
        %770 = vmatprep.subr.mxu0 0.0
        %771 = vmatpush1.msra.mxu0 0.0
        %772 = vmatprep.subr.mxu0 0.0
        %773 = vmatpush1.msra.mxu0 0.0
        %774 = vmatprep.subr.mxu0 0.0
        %775 = vmatpush1.msra.mxu0 0.0
        %776 = vmatprep.subr.mxu0 0.0
        %777 = vmatpush1.msra.mxu0 0.0
        %778 = vmatprep.subr.mxu0 0.0
        %779 = vmatpush1.msra.mxu0 0.0
        %780 = vmatprep.subr.mxu0 0.0
        %781 = vmatpush1.msra.mxu0 0.0
        %782 = vmatprep.subr.mxu0 0.0
        %783 = vmatpush1.msra.mxu0 0.0
        %784 = vmatprep.subr.mxu0 0.0
        %785 = vmatpush1.msra.mxu0 0.0
        %786 = vmatprep.mubr.f32.mxu0 0.0
        %v787 = vand.u32 %v186, 4294901760
        %788 = vmatmul.mubr.f32.gmra.mrb[0].mxu0 %v787
        %v789 = vpop.f32.mrb[0].mxu0
        %v790 = vadd.f32 %v697, %v789
        %v791 = vpop.f32.mrb[0].mxu0
        %792 = vmatprep.mubr.f32.mxu0 0.0
        %v793 = vand.u32 %v189, 4294901760
        %794 = vmatmul.mubr.f32.gmra.mrb[0].mxu0 %v793
        %v795 = vpop.f32.mrb[0].mxu0
        %v796 = vadd.f32 %v703, %v795
        %v797 = vpop.f32.mrb[0].mxu0
        %798 = vmatprep.mubr.f32.mxu0 0.0
        %v799 = vand.u32 %v192, 4294901760
        %800 = vmatmul.mubr.f32.gmra.mrb[0].mxu0 %v799
        %v801 = vpop.f32.mrb[0].mxu0
        %v802 = vadd.f32 %v709, %v801
        %v803 = vpop.f32.mrb[0].mxu0
        %804 = vmatprep.mubr.f32.mxu0 0.0
        %v805 = vand.u32 %v195, 4294901760
        %806 = vmatmul.mubr.f32.gmra.mrb[0].mxu0 %v805
        %v807 = vpop.f32.mrb[0].mxu0
        %v808 = vadd.f32 %v715, %v807
        %v809 = vpop.f32.mrb[0].mxu0
        %810 = vdwg.mxu0
        %vm811 = vcmask 64512
        %812 = vst.msk [vmem:[%s159] sm:$0xff] %vm811, %v790
        %813 = vst.msk [vmem:[%s159 + $0x8] sm:$0xff] %vm811, %v796
        %814 = vst.msk [vmem:[%s159 + $0x10] sm:$0xff] %vm811, %v802
        %815 = vst.msk [vmem:[%s159 + $0x18] sm:$0xff] %vm811, %v808
        %v816 = vadd.s32 %v171, 1
        %vm817 = vcmp.eq.s32.totalorder %v165, %v816
        %vm818 = vcmp.eq.s32.totalorder %v166, %v816
        %vm819 = vcmp.eq.s32.totalorder %v167, %v816
        %vm820 = vcmp.eq.s32.totalorder %v168, %v816
        %v821 = vsel %vm817, 1, 0
        %v822 = vsel %vm818, 1, 0
        %v823 = vsel %vm819, 1, 0
        %v824 = vsel %vm820, 1, 0
        %v825 = vcvt.s32.f32 %v821
        %v826 = vcvt.s32.f32 %v822
        %v827 = vcvt.s32.f32 %v823
        %v828 = vcvt.s32.f32 %v824
        %829 = vmatprep.subr.mxu0 0.0
        %v830 = vand.u32 %v825, 4294901760
        %831 = vmatpush1.msra.mxu0 %v830
        %832 = vmatprep.subr.mxu0 0.0
        %v833 = vand.u32 %v826, 4294901760
        %834 = vmatpush1.msra.mxu0 %v833
        %835 = vmatprep.subr.mxu0 0.0
        %v836 = vand.u32 %v827, 4294901760
        %837 = vmatpush1.msra.mxu0 %v836
        %838 = vmatprep.subr.mxu0 0.0
        %v839 = vand.u32 %v828, 4294901760
        %840 = vmatpush1.msra.mxu0 %v839
        %841 = vmatprep.subr.mxu0 0.0
        %842 = vmatpush1.msra.mxu0 0.0
        %843 = vmatprep.subr.mxu0 0.0
        %844 = vmatpush1.msra.mxu0 0.0
        %845 = vmatprep.subr.mxu0 0.0
        %846 = vmatpush1.msra.mxu0 0.0
        %847 = vmatprep.subr.mxu0 0.0
        %848 = vmatpush1.msra.mxu0 0.0
        %849 = vmatprep.subr.mxu0 0.0
        %850 = vmatpush1.msra.mxu0 0.0
        %851 = vmatprep.subr.mxu0 0.0
        %852 = vmatpush1.msra.mxu0 0.0
        %853 = vmatprep.subr.mxu0 0.0
        %854 = vmatpush1.msra.mxu0 0.0
        %855 = vmatprep.subr.mxu0 0.0
        %856 = vmatpush1.msra.mxu0 0.0
        %857 = vmatprep.subr.mxu0 0.0
        %858 = vmatpush1.msra.mxu0 0.0
        %859 = vmatprep.subr.mxu0 0.0
        %860 = vmatpush1.msra.mxu0 0.0
        %861 = vmatprep.subr.mxu0 0.0
        %862 = vmatpush1.msra.mxu0 0.0
        %863 = vmatprep.subr.mxu0 0.0
        %864 = vmatpush1.msra.mxu0 0.0
        %865 = vmatprep.subr.mxu0 0.0
        %866 = vmatpush1.msra.mxu0 0.0
        %867 = vmatprep.subr.mxu0 0.0
        %868 = vmatpush1.msra.mxu0 0.0
        %869 = vmatprep.subr.mxu0 0.0
        %870 = vmatpush1.msra.mxu0 0.0
        %871 = vmatprep.subr.mxu0 0.0
        %872 = vmatpush1.msra.mxu0 0.0
        %873 = vmatprep.subr.mxu0 0.0
        %874 = vmatpush1.msra.mxu0 0.0
        %875 = vmatprep.subr.mxu0 0.0
        %876 = vmatpush1.msra.mxu0 0.0
        %877 = vmatprep.subr.mxu0 0.0
        %878 = vmatpush1.msra.mxu0 0.0
        %879 = vmatprep.subr.mxu0 0.0
        %880 = vmatpush1.msra.mxu0 0.0
        %881 = vmatprep.subr.mxu0 0.0
        %882 = vmatpush1.msra.mxu0 0.0
        %883 = vmatprep.subr.mxu0 0.0
        %884 = vmatpush1.msra.mxu0 0.0
        %885 = vmatprep.subr.mxu0 0.0
        %886 = vmatpush1.msra.mxu0 0.0
        %887 = vmatprep.subr.mxu0 0.0
        %888 = vmatpush1.msra.mxu0 0.0
        %889 = vmatprep.subr.mxu0 0.0
        %890 = vmatpush1.msra.mxu0 0.0
        %891 = vmatprep.subr.mxu0 0.0
        %892 = vmatpush1.msra.mxu0 0.0
        %893 = vmatprep.subr.mxu0 0.0
        %894 = vmatpush1.msra.mxu0 0.0
        %895 = vmatprep.subr.mxu0 0.0
        %896 = vmatpush1.msra.mxu0 0.0
        %897 = vmatprep.mubr.f32.mxu0 0.0
        %v898 = vand.u32 %v186, 4294901760
        %v899 = vsub.f32 %v186, %v898
        %v900 = vand.u32 %v899, 4294901760
        %v901 = vsub.f32 %v899, %v900
        %v902 = vand.u32 %v901, 4294901760
        %903 = vmatmul.mubr.f32.gmra.mrb[0].mxu0 %v902
        %v904 = vpop.f32.mrb[0].mxu0
        %v905 = vadd.f32 0.0, %v904
        %v906 = vpop.f32.mrb[0].mxu0
        %907 = vmatprep.mubr.f32.mxu0 0.0
        %v908 = vand.u32 %v189, 4294901760
        %v909 = vsub.f32 %v189, %v908
        %v910 = vand.u32 %v909, 4294901760
        %v911 = vsub.f32 %v909, %v910
        %v912 = vand.u32 %v911, 4294901760
        %913 = vmatmul.mubr.f32.gmra.mrb[0].mxu0 %v912
        %v914 = vpop.f32.mrb[0].mxu0
        %v915 = vadd.f32 0.0, %v914
        %v916 = vpop.f32.mrb[0].mxu0
        %917 = vmatprep.mubr.f32.mxu0 0.0
        %v918 = vand.u32 %v192, 4294901760
        %v919 = vsub.f32 %v192, %v918
        %v920 = vand.u32 %v919, 4294901760
        %v921 = vsub.f32 %v919, %v920
        %v922 = vand.u32 %v921, 4294901760
        %923 = vmatmul.mubr.f32.gmra.mrb[0].mxu0 %v922
        %v924 = vpop.f32.mrb[0].mxu0
        %v925 = vadd.f32 0.0, %v924
        %v926 = vpop.f32.mrb[0].mxu0
        %927 = vmatprep.mubr.f32.mxu0 0.0
        %v928 = vand.u32 %v195, 4294901760
        %v929 = vsub.f32 %v195, %v928
        %v930 = vand.u32 %v929, 4294901760
        %v931 = vsub.f32 %v929, %v930
        %v932 = vand.u32 %v931, 4294901760
        %933 = vmatmul.mubr.f32.gmra.mrb[0].mxu0 %v932
        %v934 = vpop.f32.mrb[0].mxu0
        %v935 = vadd.f32 0.0, %v934
        %v936 = vpop.f32.mrb[0].mxu0
        %937 = vdwg.mxu0
        %938 = vmatprep.subr.mxu0 0.0
        %v939 = vand.u32 %v825, 4294901760
        %v940 = vsub.f32 %v825, %v939
        %v941 = vand.u32 %v940, 4294901760
        %v942 = vsub.f32 %v940, %v941
        %v943 = vand.u32 %v942, 4294901760
        %944 = vmatpush1.msra.mxu0 %v943
        %945 = vmatprep.subr.mxu0 0.0
        %v946 = vand.u32 %v826, 4294901760
        %v947 = vsub.f32 %v826, %v946
        %v948 = vand.u32 %v947, 4294901760
        %v949 = vsub.f32 %v947, %v948
        %v950 = vand.u32 %v949, 4294901760
        %951 = vmatpush1.msra.mxu0 %v950
        %952 = vmatprep.subr.mxu0 0.0
        %v953 = vand.u32 %v827, 4294901760
        %v954 = vsub.f32 %v827, %v953
        %v955 = vand.u32 %v954, 4294901760
        %v956 = vsub.f32 %v954, %v955
        %v957 = vand.u32 %v956, 4294901760
        %958 = vmatpush1.msra.mxu0 %v957
        %959 = vmatprep.subr.mxu0 0.0
        %v960 = vand.u32 %v828, 4294901760
        %v961 = vsub.f32 %v828, %v960
        %v962 = vand.u32 %v961, 4294901760
        %v963 = vsub.f32 %v961, %v962
        %v964 = vand.u32 %v963, 4294901760
        %965 = vmatpush1.msra.mxu0 %v964
        %966 = vmatprep.subr.mxu0 0.0
        %967 = vmatpush1.msra.mxu0 0.0
        %968 = vmatprep.subr.mxu0 0.0
        %969 = vmatpush1.msra.mxu0 0.0
        %970 = vmatprep.subr.mxu0 0.0
        %971 = vmatpush1.msra.mxu0 0.0
        %972 = vmatprep.subr.mxu0 0.0
        %973 = vmatpush1.msra.mxu0 0.0
        %974 = vmatprep.subr.mxu0 0.0
        %975 = vmatpush1.msra.mxu0 0.0
        %976 = vmatprep.subr.mxu0 0.0
        %977 = vmatpush1.msra.mxu0 0.0
        %978 = vmatprep.subr.mxu0 0.0
        %979 = vmatpush1.msra.mxu0 0.0
        %980 = vmatprep.subr.mxu0 0.0
        %981 = vmatpush1.msra.mxu0 0.0
        %982 = vmatprep.subr.mxu0 0.0
        %983 = vmatpush1.msra.mxu0 0.0
        %984 = vmatprep.subr.mxu0 0.0
        %985 = vmatpush1.msra.mxu0 0.0
        %986 = vmatprep.subr.mxu0 0.0
        %987 = vmatpush1.msra.mxu0 0.0
        %988 = vmatprep.subr.mxu0 0.0
        %989 = vmatpush1.msra.mxu0 0.0
        %990 = vmatprep.subr.mxu0 0.0
        %991 = vmatpush1.msra.mxu0 0.0
        %992 = vmatprep.subr.mxu0 0.0
        %993 = vmatpush1.msra.mxu0 0.0
        %994 = vmatprep.subr.mxu0 0.0
        %995 = vmatpush1.msra.mxu0 0.0
        %996 = vmatprep.subr.mxu0 0.0
        %997 = vmatpush1.msra.mxu0 0.0
        %998 = vmatprep.subr.mxu0 0.0
        %999 = vmatpush1.msra.mxu0 0.0
        %1000 = vmatprep.subr.mxu0 0.0
        %1001 = vmatpush1.msra.mxu0 0.0
        %1002 = vmatprep.subr.mxu0 0.0
        %1003 = vmatpush1.msra.mxu0 0.0
        %1004 = vmatprep.subr.mxu0 0.0
        %1005 = vmatpush1.msra.mxu0 0.0
        %1006 = vmatprep.subr.mxu0 0.0
        %1007 = vmatpush1.msra.mxu0 0.0
        %1008 = vmatprep.subr.mxu0 0.0
        %1009 = vmatpush1.msra.mxu0 0.0
        %1010 = vmatprep.subr.mxu0 0.0
        %1011 = vmatpush1.msra.mxu0 0.0
        %1012 = vmatprep.subr.mxu0 0.0
        %1013 = vmatpush1.msra.mxu0 0.0
        %1014 = vmatprep.subr.mxu0 0.0
        %1015 = vmatpush1.msra.mxu0 0.0
        %1016 = vmatprep.subr.mxu0 0.0
        %1017 = vmatpush1.msra.mxu0 0.0
        %1018 = vmatprep.subr.mxu0 0.0
        %1019 = vmatpush1.msra.mxu0 0.0
        %1020 = vmatprep.subr.mxu0 0.0
        %1021 = vmatpush1.msra.mxu0 0.0
        %1022 = vmatprep.mubr.f32.mxu0 0.0
        %v1023 = vand.u32 %v186, 4294901760
        %1024 = vmatmul.mubr.f32.gmra.mrb[0].mxu0 %v1023
        %v1025 = vpop.f32.mrb[0].mxu0
        %v1026 = vadd.f32 %v905, %v1025
        %v1027 = vpop.f32.mrb[0].mxu0
        %1028 = vmatprep.mubr.f32.mxu0 0.0
        %v1029 = vand.u32 %v189, 4294901760
        %1030 = vmatmul.mubr.f32.gmra.mrb[0].mxu0 %v1029
        %v1031 = vpop.f32.mrb[0].mxu0
        %v1032 = vadd.f32 %v915, %v1031
        %v1033 = vpop.f32.mrb[0].mxu0
        %1034 = vmatprep.mubr.f32.mxu0 0.0
        %v1035 = vand.u32 %v192, 4294901760
        %1036 = vmatmul.mubr.f32.gmra.mrb[0].mxu0 %v1035
        %v1037 = vpop.f32.mrb[0].mxu0
        %v1038 = vadd.f32 %v925, %v1037
        %v1039 = vpop.f32.mrb[0].mxu0
        %1040 = vmatprep.mubr.f32.mxu0 0.0
        %v1041 = vand.u32 %v195, 4294901760
        %1042 = vmatmul.mubr.f32.gmra.mrb[0].mxu0 %v1041
        %v1043 = vpop.f32.mrb[0].mxu0
        %v1044 = vadd.f32 %v935, %v1043
        %v1045 = vpop.f32.mrb[0].mxu0
        %1046 = vdwg.mxu0
        %1047 = vmatprep.subr.mxu0 0.0
        %v1048 = vand.u32 %v825, 4294901760
        %v1049 = vsub.f32 %v825, %v1048
        %1050 = vmatpush1.msra.mxu0 %v1049
        %1051 = vmatprep.subr.mxu0 0.0
        %v1052 = vand.u32 %v826, 4294901760
        %v1053 = vsub.f32 %v826, %v1052
        %1054 = vmatpush1.msra.mxu0 %v1053
        %1055 = vmatprep.subr.mxu0 0.0
        %v1056 = vand.u32 %v827, 4294901760
        %v1057 = vsub.f32 %v827, %v1056
        %1058 = vmatpush1.msra.mxu0 %v1057
        %1059 = vmatprep.subr.mxu0 0.0
        %v1060 = vand.u32 %v828, 4294901760
        %v1061 = vsub.f32 %v828, %v1060
        %1062 = vmatpush1.msra.mxu0 %v1061
        %1063 = vmatprep.subr.mxu0 0.0
        %1064 = vmatpush1.msra.mxu0 0.0
        %1065 = vmatprep.subr.mxu0 0.0
        %1066 = vmatpush1.msra.mxu0 0.0
        %1067 = vmatprep.subr.mxu0 0.0
        %1068 = vmatpush1.msra.mxu0 0.0
        %1069 = vmatprep.subr.mxu0 0.0
        %1070 = vmatpush1.msra.mxu0 0.0
        %1071 = vmatprep.subr.mxu0 0.0
        %1072 = vmatpush1.msra.mxu0 0.0
        %1073 = vmatprep.subr.mxu0 0.0
        %1074 = vmatpush1.msra.mxu0 0.0
        %1075 = vmatprep.subr.mxu0 0.0
        %1076 = vmatpush1.msra.mxu0 0.0
        %1077 = vmatprep.subr.mxu0 0.0
        %1078 = vmatpush1.msra.mxu0 0.0
        %1079 = vmatprep.subr.mxu0 0.0
        %1080 = vmatpush1.msra.mxu0 0.0
        %1081 = vmatprep.subr.mxu0 0.0
        %1082 = vmatpush1.msra.mxu0 0.0
        %1083 = vmatprep.subr.mxu0 0.0
        %1084 = vmatpush1.msra.mxu0 0.0
        %1085 = vmatprep.subr.mxu0 0.0
        %1086 = vmatpush1.msra.mxu0 0.0
        %1087 = vmatprep.subr.mxu0 0.0
        %1088 = vmatpush1.msra.mxu0 0.0
        %1089 = vmatprep.subr.mxu0 0.0
        %1090 = vmatpush1.msra.mxu0 0.0
        %1091 = vmatprep.subr.mxu0 0.0
        %1092 = vmatpush1.msra.mxu0 0.0
        %1093 = vmatprep.subr.mxu0 0.0
        %1094 = vmatpush1.msra.mxu0 0.0
        %1095 = vmatprep.subr.mxu0 0.0
        %1096 = vmatpush1.msra.mxu0 0.0
        %1097 = vmatprep.subr.mxu0 0.0
        %1098 = vmatpush1.msra.mxu0 0.0
        %1099 = vmatprep.subr.mxu0 0.0
        %1100 = vmatpush1.msra.mxu0 0.0
        %1101 = vmatprep.subr.mxu0 0.0
        %1102 = vmatpush1.msra.mxu0 0.0
        %1103 = vmatprep.subr.mxu0 0.0
        %1104 = vmatpush1.msra.mxu0 0.0
        %1105 = vmatprep.subr.mxu0 0.0
        %1106 = vmatpush1.msra.mxu0 0.0
        %1107 = vmatprep.subr.mxu0 0.0
        %1108 = vmatpush1.msra.mxu0 0.0
        %1109 = vmatprep.subr.mxu0 0.0
        %1110 = vmatpush1.msra.mxu0 0.0
        %1111 = vmatprep.subr.mxu0 0.0
        %1112 = vmatpush1.msra.mxu0 0.0
        %1113 = vmatprep.subr.mxu0 0.0
        %1114 = vmatpush1.msra.mxu0 0.0
        %1115 = vmatprep.subr.mxu0 0.0
        %1116 = vmatpush1.msra.mxu0 0.0
        %1117 = vmatprep.subr.mxu0 0.0
        %1118 = vmatpush1.msra.mxu0 0.0
        %1119 = vmatprep.mubr.f32.mxu0 0.0
        %v1120 = vand.u32 %v186, 4294901760
        %v1121 = vsub.f32 %v186, %v1120
        %1122 = vmatmul.mubr.f32.gmra.mrb[0].mxu0 %v1121
        %v1123 = vpop.f32.mrb[0].mxu0
        %v1124 = vadd.f32 %v1026, %v1123
        %v1125 = vpop.f32.mrb[0].mxu0
        %1126 = vmatprep.mubr.f32.mxu0 0.0
        %v1127 = vand.u32 %v189, 4294901760
        %v1128 = vsub.f32 %v189, %v1127
        %1129 = vmatmul.mubr.f32.gmra.mrb[0].mxu0 %v1128
        %v1130 = vpop.f32.mrb[0].mxu0
        %v1131 = vadd.f32 %v1032, %v1130
        %v1132 = vpop.f32.mrb[0].mxu0
        %1133 = vmatprep.mubr.f32.mxu0 0.0
        %v1134 = vand.u32 %v192, 4294901760
        %v1135 = vsub.f32 %v192, %v1134
        %1136 = vmatmul.mubr.f32.gmra.mrb[0].mxu0 %v1135
        %v1137 = vpop.f32.mrb[0].mxu0
        %v1138 = vadd.f32 %v1038, %v1137
        %v1139 = vpop.f32.mrb[0].mxu0
        %1140 = vmatprep.mubr.f32.mxu0 0.0
        %v1141 = vand.u32 %v195, 4294901760
        %v1142 = vsub.f32 %v195, %v1141
        %1143 = vmatmul.mubr.f32.gmra.mrb[0].mxu0 %v1142
        %v1144 = vpop.f32.mrb[0].mxu0
        %v1145 = vadd.f32 %v1044, %v1144
        %v1146 = vpop.f32.mrb[0].mxu0
        %1147 = vdwg.mxu0
        %1148 = vmatprep.subr.mxu0 0.0
        %v1149 = vand.u32 %v825, 4294901760
        %1150 = vmatpush1.msra.mxu0 %v1149
        %1151 = vmatprep.subr.mxu0 0.0
        %v1152 = vand.u32 %v826, 4294901760
        %1153 = vmatpush1.msra.mxu0 %v1152
        %1154 = vmatprep.subr.mxu0 0.0
        %v1155 = vand.u32 %v827, 4294901760
        %1156 = vmatpush1.msra.mxu0 %v1155
        %1157 = vmatprep.subr.mxu0 0.0
        %v1158 = vand.u32 %v828, 4294901760
        %1159 = vmatpush1.msra.mxu0 %v1158
        %1160 = vmatprep.subr.mxu0 0.0
        %1161 = vmatpush1.msra.mxu0 0.0
        %1162 = vmatprep.subr.mxu0 0.0
        %1163 = vmatpush1.msra.mxu0 0.0
        %1164 = vmatprep.subr.mxu0 0.0
        %1165 = vmatpush1.msra.mxu0 0.0
        %1166 = vmatprep.subr.mxu0 0.0
        %1167 = vmatpush1.msra.mxu0 0.0
        %1168 = vmatprep.subr.mxu0 0.0
        %1169 = vmatpush1.msra.mxu0 0.0
        %1170 = vmatprep.subr.mxu0 0.0
        %1171 = vmatpush1.msra.mxu0 0.0
        %1172 = vmatprep.subr.mxu0 0.0
        %1173 = vmatpush1.msra.mxu0 0.0
        %1174 = vmatprep.subr.mxu0 0.0
        %1175 = vmatpush1.msra.mxu0 0.0
        %1176 = vmatprep.subr.mxu0 0.0
        %1177 = vmatpush1.msra.mxu0 0.0
        %1178 = vmatprep.subr.mxu0 0.0
        %1179 = vmatpush1.msra.mxu0 0.0
        %1180 = vmatprep.subr.mxu0 0.0
        %1181 = vmatpush1.msra.mxu0 0.0
        %1182 = vmatprep.subr.mxu0 0.0
        %1183 = vmatpush1.msra.mxu0 0.0
        %1184 = vmatprep.subr.mxu0 0.0
        %1185 = vmatpush1.msra.mxu0 0.0
        %1186 = vmatprep.subr.mxu0 0.0
        %1187 = vmatpush1.msra.mxu0 0.0
        %1188 = vmatprep.subr.mxu0 0.0
        %1189 = vmatpush1.msra.mxu0 0.0
        %1190 = vmatprep.subr.mxu0 0.0
        %1191 = vmatpush1.msra.mxu0 0.0
        %1192 = vmatprep.subr.mxu0 0.0
        %1193 = vmatpush1.msra.mxu0 0.0
        %1194 = vmatprep.subr.mxu0 0.0
        %1195 = vmatpush1.msra.mxu0 0.0
        %1196 = vmatprep.subr.mxu0 0.0
        %1197 = vmatpush1.msra.mxu0 0.0
        %1198 = vmatprep.subr.mxu0 0.0
        %1199 = vmatpush1.msra.mxu0 0.0
        %1200 = vmatprep.subr.mxu0 0.0
        %1201 = vmatpush1.msra.mxu0 0.0
        %1202 = vmatprep.subr.mxu0 0.0
        %1203 = vmatpush1.msra.mxu0 0.0
        %1204 = vmatprep.subr.mxu0 0.0
        %1205 = vmatpush1.msra.mxu0 0.0
        %1206 = vmatprep.subr.mxu0 0.0
        %1207 = vmatpush1.msra.mxu0 0.0
        %1208 = vmatprep.subr.mxu0 0.0
        %1209 = vmatpush1.msra.mxu0 0.0
        %1210 = vmatprep.subr.mxu0 0.0
        %1211 = vmatpush1.msra.mxu0 0.0
        %1212 = vmatprep.subr.mxu0 0.0
        %1213 = vmatpush1.msra.mxu0 0.0
        %1214 = vmatprep.subr.mxu0 0.0
        %1215 = vmatpush1.msra.mxu0 0.0
        %1216 = vmatprep.mubr.f32.mxu0 0.0
        %v1217 = vand.u32 %v186, 4294901760
        %v1218 = vsub.f32 %v186, %v1217
        %v1219 = vand.u32 %v1218, 4294901760
        %1220 = vmatmul.mubr.f32.gmra.mrb[0].mxu0 %v1219
        %v1221 = vpop.f32.mrb[0].mxu0
        %v1222 = vadd.f32 %v1124, %v1221
        %v1223 = vpop.f32.mrb[0].mxu0
        %1224 = vmatprep.mubr.f32.mxu0 0.0
        %v1225 = vand.u32 %v189, 4294901760
        %v1226 = vsub.f32 %v189, %v1225
        %v1227 = vand.u32 %v1226, 4294901760
        %1228 = vmatmul.mubr.f32.gmra.mrb[0].mxu0 %v1227
        %v1229 = vpop.f32.mrb[0].mxu0
        %v1230 = vadd.f32 %v1131, %v1229
        %v1231 = vpop.f32.mrb[0].mxu0
        %1232 = vmatprep.mubr.f32.mxu0 0.0
        %v1233 = vand.u32 %v192, 4294901760
        %v1234 = vsub.f32 %v192, %v1233
        %v1235 = vand.u32 %v1234, 4294901760
        %1236 = vmatmul.mubr.f32.gmra.mrb[0].mxu0 %v1235
        %v1237 = vpop.f32.mrb[0].mxu0
        %v1238 = vadd.f32 %v1138, %v1237
        %v1239 = vpop.f32.mrb[0].mxu0
        %1240 = vmatprep.mubr.f32.mxu0 0.0
        %v1241 = vand.u32 %v195, 4294901760
        %v1242 = vsub.f32 %v195, %v1241
        %v1243 = vand.u32 %v1242, 4294901760
        %1244 = vmatmul.mubr.f32.gmra.mrb[0].mxu0 %v1243
        %v1245 = vpop.f32.mrb[0].mxu0
        %v1246 = vadd.f32 %v1145, %v1245
        %v1247 = vpop.f32.mrb[0].mxu0
        %1248 = vdwg.mxu0
        %1249 = vmatprep.subr.mxu0 0.0
        %v1250 = vand.u32 %v825, 4294901760
        %v1251 = vsub.f32 %v825, %v1250
        %v1252 = vand.u32 %v1251, 4294901760
        %1253 = vmatpush1.msra.mxu0 %v1252
        %1254 = vmatprep.subr.mxu0 0.0
        %v1255 = vand.u32 %v826, 4294901760
        %v1256 = vsub.f32 %v826, %v1255
        %v1257 = vand.u32 %v1256, 4294901760
        %1258 = vmatpush1.msra.mxu0 %v1257
        %1259 = vmatprep.subr.mxu0 0.0
        %v1260 = vand.u32 %v827, 4294901760
        %v1261 = vsub.f32 %v827, %v1260
        %v1262 = vand.u32 %v1261, 4294901760
        %1263 = vmatpush1.msra.mxu0 %v1262
        %1264 = vmatprep.subr.mxu0 0.0
        %v1265 = vand.u32 %v828, 4294901760
        %v1266 = vsub.f32 %v828, %v1265
        %v1267 = vand.u32 %v1266, 4294901760
        %1268 = vmatpush1.msra.mxu0 %v1267
        %1269 = vmatprep.subr.mxu0 0.0
        %1270 = vmatpush1.msra.mxu0 0.0
        %1271 = vmatprep.subr.mxu0 0.0
        %1272 = vmatpush1.msra.mxu0 0.0
        %1273 = vmatprep.subr.mxu0 0.0
        %1274 = vmatpush1.msra.mxu0 0.0
        %1275 = vmatprep.subr.mxu0 0.0
        %1276 = vmatpush1.msra.mxu0 0.0
        %1277 = vmatprep.subr.mxu0 0.0
        %1278 = vmatpush1.msra.mxu0 0.0
        %1279 = vmatprep.subr.mxu0 0.0
        %1280 = vmatpush1.msra.mxu0 0.0
        %1281 = vmatprep.subr.mxu0 0.0
        %1282 = vmatpush1.msra.mxu0 0.0
        %1283 = vmatprep.subr.mxu0 0.0
        %1284 = vmatpush1.msra.mxu0 0.0
        %1285 = vmatprep.subr.mxu0 0.0
        %1286 = vmatpush1.msra.mxu0 0.0
        %1287 = vmatprep.subr.mxu0 0.0
        %1288 = vmatpush1.msra.mxu0 0.0
        %1289 = vmatprep.subr.mxu0 0.0
        %1290 = vmatpush1.msra.mxu0 0.0
        %1291 = vmatprep.subr.mxu0 0.0
        %1292 = vmatpush1.msra.mxu0 0.0
        %1293 = vmatprep.subr.mxu0 0.0
        %1294 = vmatpush1.msra.mxu0 0.0
        %1295 = vmatprep.subr.mxu0 0.0
        %1296 = vmatpush1.msra.mxu0 0.0
        %1297 = vmatprep.subr.mxu0 0.0
        %1298 = vmatpush1.msra.mxu0 0.0
        %1299 = vmatprep.subr.mxu0 0.0
        %1300 = vmatpush1.msra.mxu0 0.0
        %1301 = vmatprep.subr.mxu0 0.0
        %1302 = vmatpush1.msra.mxu0 0.0
        %1303 = vmatprep.subr.mxu0 0.0
        %1304 = vmatpush1.msra.mxu0 0.0
        %1305 = vmatprep.subr.mxu0 0.0
        %1306 = vmatpush1.msra.mxu0 0.0
        %1307 = vmatprep.subr.mxu0 0.0
        %1308 = vmatpush1.msra.mxu0 0.0
        %1309 = vmatprep.subr.mxu0 0.0
        %1310 = vmatpush1.msra.mxu0 0.0
        %1311 = vmatprep.subr.mxu0 0.0
        %1312 = vmatpush1.msra.mxu0 0.0
        %1313 = vmatprep.subr.mxu0 0.0
        %1314 = vmatpush1.msra.mxu0 0.0
        %1315 = vmatprep.subr.mxu0 0.0
        %1316 = vmatpush1.msra.mxu0 0.0
        %1317 = vmatprep.subr.mxu0 0.0
        %1318 = vmatpush1.msra.mxu0 0.0
        %1319 = vmatprep.subr.mxu0 0.0
        %1320 = vmatpush1.msra.mxu0 0.0
        %1321 = vmatprep.subr.mxu0 0.0
        %1322 = vmatpush1.msra.mxu0 0.0
        %1323 = vmatprep.subr.mxu0 0.0
        %1324 = vmatpush1.msra.mxu0 0.0
        %1325 = vmatprep.mubr.f32.mxu0 0.0
        %v1326 = vand.u32 %v186, 4294901760
        %1327 = vmatmul.mubr.f32.gmra.mrb[0].mxu0 %v1326
        %v1328 = vpop.f32.mrb[0].mxu0
        %v1329 = vadd.f32 %v1222, %v1328
        %v1330 = vpop.f32.mrb[0].mxu0
        %1331 = vmatprep.mubr.f32.mxu0 0.0
        %v1332 = vand.u32 %v189, 4294901760
        %1333 = vmatmul.mubr.f32.gmra.mrb[0].mxu0 %v1332
        %v1334 = vpop.f32.mrb[0].mxu0
        %v1335 = vadd.f32 %v1230, %v1334
        %v1336 = vpop.f32.mrb[0].mxu0
        %1337 = vmatprep.mubr.f32.mxu0 0.0
        %v1338 = vand.u32 %v192, 4294901760
        %1339 = vmatmul.mubr.f32.gmra.mrb[0].mxu0 %v1338
        %v1340 = vpop.f32.mrb[0].mxu0
        %v1341 = vadd.f32 %v1238, %v1340
        %v1342 = vpop.f32.mrb[0].mxu0
        %1343 = vmatprep.mubr.f32.mxu0 0.0
        %v1344 = vand.u32 %v195, 4294901760
        %1345 = vmatmul.mubr.f32.gmra.mrb[0].mxu0 %v1344
        %v1346 = vpop.f32.mrb[0].mxu0
        %v1347 = vadd.f32 %v1246, %v1346
        %v1348 = vpop.f32.mrb[0].mxu0
        %1349 = vdwg.mxu0
        %1350 = vmatprep.subr.mxu0 0.0
        %v1351 = vand.u32 %v825, 4294901760
        %1352 = vmatpush1.msra.mxu0 %v1351
        %1353 = vmatprep.subr.mxu0 0.0
        %v1354 = vand.u32 %v826, 4294901760
        %1355 = vmatpush1.msra.mxu0 %v1354
        %1356 = vmatprep.subr.mxu0 0.0
        %v1357 = vand.u32 %v827, 4294901760
        %1358 = vmatpush1.msra.mxu0 %v1357
        %1359 = vmatprep.subr.mxu0 0.0
        %v1360 = vand.u32 %v828, 4294901760
        %1361 = vmatpush1.msra.mxu0 %v1360
        %1362 = vmatprep.subr.mxu0 0.0
        %1363 = vmatpush1.msra.mxu0 0.0
        %1364 = vmatprep.subr.mxu0 0.0
        %1365 = vmatpush1.msra.mxu0 0.0
        %1366 = vmatprep.subr.mxu0 0.0
        %1367 = vmatpush1.msra.mxu0 0.0
        %1368 = vmatprep.subr.mxu0 0.0
        %1369 = vmatpush1.msra.mxu0 0.0
        %1370 = vmatprep.subr.mxu0 0.0
        %1371 = vmatpush1.msra.mxu0 0.0
        %1372 = vmatprep.subr.mxu0 0.0
        %1373 = vmatpush1.msra.mxu0 0.0
        %1374 = vmatprep.subr.mxu0 0.0
        %1375 = vmatpush1.msra.mxu0 0.0
        %1376 = vmatprep.subr.mxu0 0.0
        %1377 = vmatpush1.msra.mxu0 0.0
        %1378 = vmatprep.subr.mxu0 0.0
        %1379 = vmatpush1.msra.mxu0 0.0
        %1380 = vmatprep.subr.mxu0 0.0
        %1381 = vmatpush1.msra.mxu0 0.0
        %1382 = vmatprep.subr.mxu0 0.0
        %1383 = vmatpush1.msra.mxu0 0.0
        %1384 = vmatprep.subr.mxu0 0.0
        %1385 = vmatpush1.msra.mxu0 0.0
        %1386 = vmatprep.subr.mxu0 0.0
        %1387 = vmatpush1.msra.mxu0 0.0
        %1388 = vmatprep.subr.mxu0 0.0
        %1389 = vmatpush1.msra.mxu0 0.0
        %1390 = vmatprep.subr.mxu0 0.0
        %1391 = vmatpush1.msra.mxu0 0.0
        %1392 = vmatprep.subr.mxu0 0.0
        %1393 = vmatpush1.msra.mxu0 0.0
        %1394 = vmatprep.subr.mxu0 0.0
        %1395 = vmatpush1.msra.mxu0 0.0
        %1396 = vmatprep.subr.mxu0 0.0
        %1397 = vmatpush1.msra.mxu0 0.0
        %1398 = vmatprep.subr.mxu0 0.0
        %1399 = vmatpush1.msra.mxu0 0.0
        %1400 = vmatprep.subr.mxu0 0.0
        %1401 = vmatpush1.msra.mxu0 0.0
        %1402 = vmatprep.subr.mxu0 0.0
        %1403 = vmatpush1.msra.mxu0 0.0
        %1404 = vmatprep.subr.mxu0 0.0
        %1405 = vmatpush1.msra.mxu0 0.0
        %1406 = vmatprep.subr.mxu0 0.0
        %1407 = vmatpush1.msra.mxu0 0.0
        %1408 = vmatprep.subr.mxu0 0.0
        %1409 = vmatpush1.msra.mxu0 0.0
        %1410 = vmatprep.subr.mxu0 0.0
        %1411 = vmatpush1.msra.mxu0 0.0
        %1412 = vmatprep.subr.mxu0 0.0
        %1413 = vmatpush1.msra.mxu0 0.0
        %1414 = vmatprep.subr.mxu0 0.0
        %1415 = vmatpush1.msra.mxu0 0.0
        %1416 = vmatprep.subr.mxu0 0.0
        %1417 = vmatpush1.msra.mxu0 0.0
        %1418 = vmatprep.mubr.f32.mxu0 0.0
        %v1419 = vand.u32 %v186, 4294901760
        %1420 = vmatmul.mubr.f32.gmra.mrb[0].mxu0 %v1419
        %v1421 = vpop.f32.mrb[0].mxu0
        %v1422 = vadd.f32 %v1329, %v1421
        %v1423 = vpop.f32.mrb[0].mxu0
        %1424 = vmatprep.mubr.f32.mxu0 0.0
        %v1425 = vand.u32 %v189, 4294901760
        %1426 = vmatmul.mubr.f32.gmra.mrb[0].mxu0 %v1425
        %v1427 = vpop.f32.mrb[0].mxu0
        %v1428 = vadd.f32 %v1335, %v1427
        %v1429 = vpop.f32.mrb[0].mxu0
        %1430 = vmatprep.mubr.f32.mxu0 0.0
        %v1431 = vand.u32 %v192, 4294901760
        %1432 = vmatmul.mubr.f32.gmra.mrb[0].mxu0 %v1431
        %v1433 = vpop.f32.mrb[0].mxu0
        %v1434 = vadd.f32 %v1341, %v1433
        %v1435 = vpop.f32.mrb[0].mxu0
        %1436 = vmatprep.mubr.f32.mxu0 0.0
        %v1437 = vand.u32 %v195, 4294901760
        %1438 = vmatmul.mubr.f32.gmra.mrb[0].mxu0 %v1437
        %v1439 = vpop.f32.mrb[0].mxu0
        %v1440 = vadd.f32 %v1347, %v1439
        %v1441 = vpop.f32.mrb[0].mxu0
        %1442 = vdwg.mxu0
        %s1443 = scalar_lea.vmem %s159, 32
        %1444 = vst.msk [vmem:[%s1443] sm:$0xff] %vm811, %v1422
        %1445 = vst.msk [vmem:[%s1443 + $0x8] sm:$0xff] %vm811, %v1428
        %1446 = vst.msk [vmem:[%s1443 + $0x10] sm:$0xff] %vm811, %v1434
        %1447 = vst.msk [vmem:[%s1443 + $0x18] sm:$0xff] %vm811, %v1440
        %v1448 = vadd.s32 %v171, 16
        %vm1449 = vcmp.eq.s32.totalorder %v165, %v1448
        %vm1450 = vcmp.eq.s32.totalorder %v166, %v1448
        %vm1451 = vcmp.eq.s32.totalorder %v167, %v1448
        %vm1452 = vcmp.eq.s32.totalorder %v168, %v1448
        %v1453 = vsel %vm1449, 1, 0
        %v1454 = vsel %vm1450, 1, 0
        %v1455 = vsel %vm1451, 1, 0
        %v1456 = vsel %vm1452, 1, 0
        %v1457 = vcvt.s32.f32 %v1453
        %v1458 = vcvt.s32.f32 %v1454
        %v1459 = vcvt.s32.f32 %v1455
        %v1460 = vcvt.s32.f32 %v1456
        %1461 = vmatprep.subr.mxu0 0.0
        %v1462 = vand.u32 %v1457, 4294901760
        %1463 = vmatpush1.msra.mxu0 %v1462
        %1464 = vmatprep.subr.mxu0 0.0
        %v1465 = vand.u32 %v1458, 4294901760
        %1466 = vmatpush1.msra.mxu0 %v1465
        %1467 = vmatprep.subr.mxu0 0.0
        %v1468 = vand.u32 %v1459, 4294901760
        %1469 = vmatpush1.msra.mxu0 %v1468
        %1470 = vmatprep.subr.mxu0 0.0
        %v1471 = vand.u32 %v1460, 4294901760
        %1472 = vmatpush1.msra.mxu0 %v1471
        %1473 = vmatprep.subr.mxu0 0.0
        %1474 = vmatpush1.msra.mxu0 0.0
        %1475 = vmatprep.subr.mxu0 0.0
        %1476 = vmatpush1.msra.mxu0 0.0
        %1477 = vmatprep.subr.mxu0 0.0
        %1478 = vmatpush1.msra.mxu0 0.0
        %1479 = vmatprep.subr.mxu0 0.0
        %1480 = vmatpush1.msra.mxu0 0.0
        %1481 = vmatprep.subr.mxu0 0.0
        %1482 = vmatpush1.msra.mxu0 0.0
        %1483 = vmatprep.subr.mxu0 0.0
        %1484 = vmatpush1.msra.mxu0 0.0
        %1485 = vmatprep.subr.mxu0 0.0
        %1486 = vmatpush1.msra.mxu0 0.0
        %1487 = vmatprep.subr.mxu0 0.0
        %1488 = vmatpush1.msra.mxu0 0.0
        %1489 = vmatprep.subr.mxu0 0.0
        %1490 = vmatpush1.msra.mxu0 0.0
        %1491 = vmatprep.subr.mxu0 0.0
        %1492 = vmatpush1.msra.mxu0 0.0
        %1493 = vmatprep.subr.mxu0 0.0
        %1494 = vmatpush1.msra.mxu0 0.0
        %1495 = vmatprep.subr.mxu0 0.0
        %1496 = vmatpush1.msra.mxu0 0.0
        %1497 = vmatprep.subr.mxu0 0.0
        %1498 = vmatpush1.msra.mxu0 0.0
        %1499 = vmatprep.subr.mxu0 0.0
        %1500 = vmatpush1.msra.mxu0 0.0
        %1501 = vmatprep.subr.mxu0 0.0
        %1502 = vmatpush1.msra.mxu0 0.0
        %1503 = vmatprep.subr.mxu0 0.0
        %1504 = vmatpush1.msra.mxu0 0.0
        %1505 = vmatprep.subr.mxu0 0.0
        %1506 = vmatpush1.msra.mxu0 0.0
        %1507 = vmatprep.subr.mxu0 0.0
        %1508 = vmatpush1.msra.mxu0 0.0
        %1509 = vmatprep.subr.mxu0 0.0
        %1510 = vmatpush1.msra.mxu0 0.0
        %1511 = vmatprep.subr.mxu0 0.0
        %1512 = vmatpush1.msra.mxu0 0.0
        %1513 = vmatprep.subr.mxu0 0.0
        %1514 = vmatpush1.msra.mxu0 0.0
        %1515 = vmatprep.subr.mxu0 0.0
        %1516 = vmatpush1.msra.mxu0 0.0
        %1517 = vmatprep.subr.mxu0 0.0
        %1518 = vmatpush1.msra.mxu0 0.0
        %1519 = vmatprep.subr.mxu0 0.0
        %1520 = vmatpush1.msra.mxu0 0.0
        %1521 = vmatprep.subr.mxu0 0.0
        %1522 = vmatpush1.msra.mxu0 0.0
        %1523 = vmatprep.subr.mxu0 0.0
        %1524 = vmatpush1.msra.mxu0 0.0
        %1525 = vmatprep.subr.mxu0 0.0
        %1526 = vmatpush1.msra.mxu0 0.0
        %1527 = vmatprep.subr.mxu0 0.0
        %1528 = vmatpush1.msra.mxu0 0.0
        %1529 = vmatprep.mubr.f32.mxu0 0.0
        %v1530 = vand.u32 %v186, 4294901760
        %v1531 = vsub.f32 %v186, %v1530
        %v1532 = vand.u32 %v1531, 4294901760
        %v1533 = vsub.f32 %v1531, %v1532
        %v1534 = vand.u32 %v1533, 4294901760
        %1535 = vmatmul.mubr.f32.gmra.mrb[0].mxu0 %v1534
        %v1536 = vpop.f32.mrb[0].mxu0
        %v1537 = vadd.f32 0.0, %v1536
        %v1538 = vpop.f32.mrb[0].mxu0
        %1539 = vmatprep.mubr.f32.mxu0 0.0
        %v1540 = vand.u32 %v189, 4294901760
        %v1541 = vsub.f32 %v189, %v1540
        %v1542 = vand.u32 %v1541, 4294901760
        %v1543 = vsub.f32 %v1541, %v1542
        %v1544 = vand.u32 %v1543, 4294901760
        %1545 = vmatmul.mubr.f32.gmra.mrb[0].mxu0 %v1544
        %v1546 = vpop.f32.mrb[0].mxu0
        %v1547 = vadd.f32 0.0, %v1546
        %v1548 = vpop.f32.mrb[0].mxu0
        %1549 = vmatprep.mubr.f32.mxu0 0.0
        %v1550 = vand.u32 %v192, 4294901760
        %v1551 = vsub.f32 %v192, %v1550
        %v1552 = vand.u32 %v1551, 4294901760
        %v1553 = vsub.f32 %v1551, %v1552
        %v1554 = vand.u32 %v1553, 4294901760
        %1555 = vmatmul.mubr.f32.gmra.mrb[0].mxu0 %v1554
        %v1556 = vpop.f32.mrb[0].mxu0
        %v1557 = vadd.f32 0.0, %v1556
        %v1558 = vpop.f32.mrb[0].mxu0
        %1559 = vmatprep.mubr.f32.mxu0 0.0
        %v1560 = vand.u32 %v195, 4294901760
        %v1561 = vsub.f32 %v195, %v1560
        %v1562 = vand.u32 %v1561, 4294901760
        %v1563 = vsub.f32 %v1561, %v1562
        %v1564 = vand.u32 %v1563, 4294901760
        %1565 = vmatmul.mubr.f32.gmra.mrb[0].mxu0 %v1564
        %v1566 = vpop.f32.mrb[0].mxu0
        %v1567 = vadd.f32 0.0, %v1566
        %v1568 = vpop.f32.mrb[0].mxu0
        %1569 = vdwg.mxu0
        %1570 = vmatprep.subr.mxu0 0.0
        %v1571 = vand.u32 %v1457, 4294901760
        %v1572 = vsub.f32 %v1457, %v1571
        %v1573 = vand.u32 %v1572, 4294901760
        %v1574 = vsub.f32 %v1572, %v1573
        %v1575 = vand.u32 %v1574, 4294901760
        %1576 = vmatpush1.msra.mxu0 %v1575
        %1577 = vmatprep.subr.mxu0 0.0
        %v1578 = vand.u32 %v1458, 4294901760
        %v1579 = vsub.f32 %v1458, %v1578
        %v1580 = vand.u32 %v1579, 4294901760
        %v1581 = vsub.f32 %v1579, %v1580
        %v1582 = vand.u32 %v1581, 4294901760
        %1583 = vmatpush1.msra.mxu0 %v1582
        %1584 = vmatprep.subr.mxu0 0.0
        %v1585 = vand.u32 %v1459, 4294901760
        %v1586 = vsub.f32 %v1459, %v1585
        %v1587 = vand.u32 %v1586, 4294901760
        %v1588 = vsub.f32 %v1586, %v1587
        %v1589 = vand.u32 %v1588, 4294901760
        %1590 = vmatpush1.msra.mxu0 %v1589
        %1591 = vmatprep.subr.mxu0 0.0
        %v1592 = vand.u32 %v1460, 4294901760
        %v1593 = vsub.f32 %v1460, %v1592
        %v1594 = vand.u32 %v1593, 4294901760
        %v1595 = vsub.f32 %v1593, %v1594
        %v1596 = vand.u32 %v1595, 4294901760
        %1597 = vmatpush1.msra.mxu0 %v1596
        %1598 = vmatprep.subr.mxu0 0.0
        %1599 = vmatpush1.msra.mxu0 0.0
        %1600 = vmatprep.subr.mxu0 0.0
        %1601 = vmatpush1.msra.mxu0 0.0
        %1602 = vmatprep.subr.mxu0 0.0
        %1603 = vmatpush1.msra.mxu0 0.0
        %1604 = vmatprep.subr.mxu0 0.0
        %1605 = vmatpush1.msra.mxu0 0.0
        %1606 = vmatprep.subr.mxu0 0.0
        %1607 = vmatpush1.msra.mxu0 0.0
        %1608 = vmatprep.subr.mxu0 0.0
        %1609 = vmatpush1.msra.mxu0 0.0
        %1610 = vmatprep.subr.mxu0 0.0
        %1611 = vmatpush1.msra.mxu0 0.0
        %1612 = vmatprep.subr.mxu0 0.0
        %1613 = vmatpush1.msra.mxu0 0.0
        %1614 = vmatprep.subr.mxu0 0.0
        %1615 = vmatpush1.msra.mxu0 0.0
        %1616 = vmatprep.subr.mxu0 0.0
        %1617 = vmatpush1.msra.mxu0 0.0
        %1618 = vmatprep.subr.mxu0 0.0
        %1619 = vmatpush1.msra.mxu0 0.0
        %1620 = vmatprep.subr.mxu0 0.0
        %1621 = vmatpush1.msra.mxu0 0.0
        %1622 = vmatprep.subr.mxu0 0.0
        %1623 = vmatpush1.msra.mxu0 0.0
        %1624 = vmatprep.subr.mxu0 0.0
        %1625 = vmatpush1.msra.mxu0 0.0
        %1626 = vmatprep.subr.mxu0 0.0
        %1627 = vmatpush1.msra.mxu0 0.0
        %1628 = vmatprep.subr.mxu0 0.0
        %1629 = vmatpush1.msra.mxu0 0.0
        %1630 = vmatprep.subr.mxu0 0.0
        %1631 = vmatpush1.msra.mxu0 0.0
        %1632 = vmatprep.subr.mxu0 0.0
        %1633 = vmatpush1.msra.mxu0 0.0
        %1634 = vmatprep.subr.mxu0 0.0
        %1635 = vmatpush1.msra.mxu0 0.0
        %1636 = vmatprep.subr.mxu0 0.0
        %1637 = vmatpush1.msra.mxu0 0.0
        %1638 = vmatprep.subr.mxu0 0.0
        %1639 = vmatpush1.msra.mxu0 0.0
        %1640 = vmatprep.subr.mxu0 0.0
        %1641 = vmatpush1.msra.mxu0 0.0
        %1642 = vmatprep.subr.mxu0 0.0
        %1643 = vmatpush1.msra.mxu0 0.0
        %1644 = vmatprep.subr.mxu0 0.0
        %1645 = vmatpush1.msra.mxu0 0.0
        %1646 = vmatprep.subr.mxu0 0.0
        %1647 = vmatpush1.msra.mxu0 0.0
        %1648 = vmatprep.subr.mxu0 0.0
        %1649 = vmatpush1.msra.mxu0 0.0
        %1650 = vmatprep.subr.mxu0 0.0
        %1651 = vmatpush1.msra.mxu0 0.0
        %1652 = vmatprep.subr.mxu0 0.0
        %1653 = vmatpush1.msra.mxu0 0.0
        %1654 = vmatprep.mubr.f32.mxu0 0.0
        %v1655 = vand.u32 %v186, 4294901760
        %1656 = vmatmul.mubr.f32.gmra.mrb[0].mxu0 %v1655
        %v1657 = vpop.f32.mrb[0].mxu0
        %v1658 = vadd.f32 %v1537, %v1657
        %v1659 = vpop.f32.mrb[0].mxu0
        %1660 = vmatprep.mubr.f32.mxu0 0.0
        %v1661 = vand.u32 %v189, 4294901760
        %1662 = vmatmul.mubr.f32.gmra.mrb[0].mxu0 %v1661
        %v1663 = vpop.f32.mrb[0].mxu0
        %v1664 = vadd.f32 %v1547, %v1663
        %v1665 = vpop.f32.mrb[0].mxu0
        %1666 = vmatprep.mubr.f32.mxu0 0.0
        %v1667 = vand.u32 %v192, 4294901760
        %1668 = vmatmul.mubr.f32.gmra.mrb[0].mxu0 %v1667
        %v1669 = vpop.f32.mrb[0].mxu0
        %v1670 = vadd.f32 %v1557, %v1669
        %v1671 = vpop.f32.mrb[0].mxu0
        %1672 = vmatprep.mubr.f32.mxu0 0.0
        %v1673 = vand.u32 %v195, 4294901760
        %1674 = vmatmul.mubr.f32.gmra.mrb[0].mxu0 %v1673
        %v1675 = vpop.f32.mrb[0].mxu0
        %v1676 = vadd.f32 %v1567, %v1675
        %v1677 = vpop.f32.mrb[0].mxu0
        %1678 = vdwg.mxu0
        %1679 = vmatprep.subr.mxu0 0.0
        %v1680 = vand.u32 %v1457, 4294901760
        %v1681 = vsub.f32 %v1457, %v1680
        %1682 = vmatpush1.msra.mxu0 %v1681
        %1683 = vmatprep.subr.mxu0 0.0
        %v1684 = vand.u32 %v1458, 4294901760
        %v1685 = vsub.f32 %v1458, %v1684
        %1686 = vmatpush1.msra.mxu0 %v1685
        %1687 = vmatprep.subr.mxu0 0.0
        %v1688 = vand.u32 %v1459, 4294901760
        %v1689 = vsub.f32 %v1459, %v1688
        %1690 = vmatpush1.msra.mxu0 %v1689
        %1691 = vmatprep.subr.mxu0 0.0
        %v1692 = vand.u32 %v1460, 4294901760
        %v1693 = vsub.f32 %v1460, %v1692
        %1694 = vmatpush1.msra.mxu0 %v1693
        %1695 = vmatprep.subr.mxu0 0.0
        %1696 = vmatpush1.msra.mxu0 0.0
        %1697 = vmatprep.subr.mxu0 0.0
        %1698 = vmatpush1.msra.mxu0 0.0
        %1699 = vmatprep.subr.mxu0 0.0
        %1700 = vmatpush1.msra.mxu0 0.0
        %1701 = vmatprep.subr.mxu0 0.0
        %1702 = vmatpush1.msra.mxu0 0.0
        %1703 = vmatprep.subr.mxu0 0.0
        %1704 = vmatpush1.msra.mxu0 0.0
        %1705 = vmatprep.subr.mxu0 0.0
        %1706 = vmatpush1.msra.mxu0 0.0
        %1707 = vmatprep.subr.mxu0 0.0
        %1708 = vmatpush1.msra.mxu0 0.0
        %1709 = vmatprep.subr.mxu0 0.0
        %1710 = vmatpush1.msra.mxu0 0.0
        %1711 = vmatprep.subr.mxu0 0.0
        %1712 = vmatpush1.msra.mxu0 0.0
        %1713 = vmatprep.subr.mxu0 0.0
        %1714 = vmatpush1.msra.mxu0 0.0
        %1715 = vmatprep.subr.mxu0 0.0
        %1716 = vmatpush1.msra.mxu0 0.0
        %1717 = vmatprep.subr.mxu0 0.0
        %1718 = vmatpush1.msra.mxu0 0.0
        %1719 = vmatprep.subr.mxu0 0.0
        %1720 = vmatpush1.msra.mxu0 0.0
        %1721 = vmatprep.subr.mxu0 0.0
        %1722 = vmatpush1.msra.mxu0 0.0
        %1723 = vmatprep.subr.mxu0 0.0
        %1724 = vmatpush1.msra.mxu0 0.0
        %1725 = vmatprep.subr.mxu0 0.0
        %1726 = vmatpush1.msra.mxu0 0.0
        %1727 = vmatprep.subr.mxu0 0.0
        %1728 = vmatpush1.msra.mxu0 0.0
        %1729 = vmatprep.subr.mxu0 0.0
        %1730 = vmatpush1.msra.mxu0 0.0
        %1731 = vmatprep.subr.mxu0 0.0
        %1732 = vmatpush1.msra.mxu0 0.0
        %1733 = vmatprep.subr.mxu0 0.0
        %1734 = vmatpush1.msra.mxu0 0.0
        %1735 = vmatprep.subr.mxu0 0.0
        %1736 = vmatpush1.msra.mxu0 0.0
        %1737 = vmatprep.subr.mxu0 0.0
        %1738 = vmatpush1.msra.mxu0 0.0
        %1739 = vmatprep.subr.mxu0 0.0
        %1740 = vmatpush1.msra.mxu0 0.0
        %1741 = vmatprep.subr.mxu0 0.0
        %1742 = vmatpush1.msra.mxu0 0.0
        %1743 = vmatprep.subr.mxu0 0.0
        %1744 = vmatpush1.msra.mxu0 0.0
        %1745 = vmatprep.subr.mxu0 0.0
        %1746 = vmatpush1.msra.mxu0 0.0
        %1747 = vmatprep.subr.mxu0 0.0
        %1748 = vmatpush1.msra.mxu0 0.0
        %1749 = vmatprep.subr.mxu0 0.0
        %1750 = vmatpush1.msra.mxu0 0.0
        %1751 = vmatprep.mubr.f32.mxu0 0.0
        %v1752 = vand.u32 %v186, 4294901760
        %v1753 = vsub.f32 %v186, %v1752
        %1754 = vmatmul.mubr.f32.gmra.mrb[0].mxu0 %v1753
        %v1755 = vpop.f32.mrb[0].mxu0
        %v1756 = vadd.f32 %v1658, %v1755
        %v1757 = vpop.f32.mrb[0].mxu0
        %1758 = vmatprep.mubr.f32.mxu0 0.0
        %v1759 = vand.u32 %v189, 4294901760
        %v1760 = vsub.f32 %v189, %v1759
        %1761 = vmatmul.mubr.f32.gmra.mrb[0].mxu0 %v1760
        %v1762 = vpop.f32.mrb[0].mxu0
        %v1763 = vadd.f32 %v1664, %v1762
        %v1764 = vpop.f32.mrb[0].mxu0
        %1765 = vmatprep.mubr.f32.mxu0 0.0
        %v1766 = vand.u32 %v192, 4294901760
        %v1767 = vsub.f32 %v192, %v1766
        %1768 = vmatmul.mubr.f32.gmra.mrb[0].mxu0 %v1767
        %v1769 = vpop.f32.mrb[0].mxu0
        %v1770 = vadd.f32 %v1670, %v1769
        %v1771 = vpop.f32.mrb[0].mxu0
        %1772 = vmatprep.mubr.f32.mxu0 0.0
        %v1773 = vand.u32 %v195, 4294901760
        %v1774 = vsub.f32 %v195, %v1773
        %1775 = vmatmul.mubr.f32.gmra.mrb[0].mxu0 %v1774
        %v1776 = vpop.f32.mrb[0].mxu0
        %v1777 = vadd.f32 %v1676, %v1776
        %v1778 = vpop.f32.mrb[0].mxu0
        %1779 = vdwg.mxu0
        %1780 = vmatprep.subr.mxu0 0.0
        %v1781 = vand.u32 %v1457, 4294901760
        %1782 = vmatpush1.msra.mxu0 %v1781
        %1783 = vmatprep.subr.mxu0 0.0
        %v1784 = vand.u32 %v1458, 4294901760
        %1785 = vmatpush1.msra.mxu0 %v1784
        %1786 = vmatprep.subr.mxu0 0.0
        %v1787 = vand.u32 %v1459, 4294901760
        %1788 = vmatpush1.msra.mxu0 %v1787
        %1789 = vmatprep.subr.mxu0 0.0
        %v1790 = vand.u32 %v1460, 4294901760
        %1791 = vmatpush1.msra.mxu0 %v1790
        %1792 = vmatprep.subr.mxu0 0.0
        %1793 = vmatpush1.msra.mxu0 0.0
        %1794 = vmatprep.subr.mxu0 0.0
        %1795 = vmatpush1.msra.mxu0 0.0
        %1796 = vmatprep.subr.mxu0 0.0
        %1797 = vmatpush1.msra.mxu0 0.0
        %1798 = vmatprep.subr.mxu0 0.0
        %1799 = vmatpush1.msra.mxu0 0.0
        %1800 = vmatprep.subr.mxu0 0.0
        %1801 = vmatpush1.msra.mxu0 0.0
        %1802 = vmatprep.subr.mxu0 0.0
        %1803 = vmatpush1.msra.mxu0 0.0
        %1804 = vmatprep.subr.mxu0 0.0
        %1805 = vmatpush1.msra.mxu0 0.0
        %1806 = vmatprep.subr.mxu0 0.0
        %1807 = vmatpush1.msra.mxu0 0.0
        %1808 = vmatprep.subr.mxu0 0.0
        %1809 = vmatpush1.msra.mxu0 0.0
        %1810 = vmatprep.subr.mxu0 0.0
        %1811 = vmatpush1.msra.mxu0 0.0
        %1812 = vmatprep.subr.mxu0 0.0
        %1813 = vmatpush1.msra.mxu0 0.0
        %1814 = vmatprep.subr.mxu0 0.0
        %1815 = vmatpush1.msra.mxu0 0.0
        %1816 = vmatprep.subr.mxu0 0.0
        %1817 = vmatpush1.msra.mxu0 0.0
        %1818 = vmatprep.subr.mxu0 0.0
        %1819 = vmatpush1.msra.mxu0 0.0
        %1820 = vmatprep.subr.mxu0 0.0
        %1821 = vmatpush1.msra.mxu0 0.0
        %1822 = vmatprep.subr.mxu0 0.0
        %1823 = vmatpush1.msra.mxu0 0.0
        %1824 = vmatprep.subr.mxu0 0.0
        %1825 = vmatpush1.msra.mxu0 0.0
        %1826 = vmatprep.subr.mxu0 0.0
        %1827 = vmatpush1.msra.mxu0 0.0
        %1828 = vmatprep.subr.mxu0 0.0
        %1829 = vmatpush1.msra.mxu0 0.0
        %1830 = vmatprep.subr.mxu0 0.0
        %1831 = vmatpush1.msra.mxu0 0.0
        %1832 = vmatprep.subr.mxu0 0.0
        %1833 = vmatpush1.msra.mxu0 0.0
        %1834 = vmatprep.subr.mxu0 0.0
        %1835 = vmatpush1.msra.mxu0 0.0
        %1836 = vmatprep.subr.mxu0 0.0
        %1837 = vmatpush1.msra.mxu0 0.0
        %1838 = vmatprep.subr.mxu0 0.0
        %1839 = vmatpush1.msra.mxu0 0.0
        %1840 = vmatprep.subr.mxu0 0.0
        %1841 = vmatpush1.msra.mxu0 0.0
        %1842 = vmatprep.subr.mxu0 0.0
        %1843 = vmatpush1.msra.mxu0 0.0
        %1844 = vmatprep.subr.mxu0 0.0
        %1845 = vmatpush1.msra.mxu0 0.0
        %1846 = vmatprep.subr.mxu0 0.0
        %1847 = vmatpush1.msra.mxu0 0.0
        %1848 = vmatprep.mubr.f32.mxu0 0.0
        %v1849 = vand.u32 %v186, 4294901760
        %v1850 = vsub.f32 %v186, %v1849
        %v1851 = vand.u32 %v1850, 4294901760
        %1852 = vmatmul.mubr.f32.gmra.mrb[0].mxu0 %v1851
        %v1853 = vpop.f32.mrb[0].mxu0
        %v1854 = vadd.f32 %v1756, %v1853
        %v1855 = vpop.f32.mrb[0].mxu0
        %1856 = vmatprep.mubr.f32.mxu0 0.0
        %v1857 = vand.u32 %v189, 4294901760
        %v1858 = vsub.f32 %v189, %v1857
        %v1859 = vand.u32 %v1858, 4294901760
        %1860 = vmatmul.mubr.f32.gmra.mrb[0].mxu0 %v1859
        %v1861 = vpop.f32.mrb[0].mxu0
        %v1862 = vadd.f32 %v1763, %v1861
        %v1863 = vpop.f32.mrb[0].mxu0
        %1864 = vmatprep.mubr.f32.mxu0 0.0
        %v1865 = vand.u32 %v192, 4294901760
        %v1866 = vsub.f32 %v192, %v1865
        %v1867 = vand.u32 %v1866, 4294901760
        %1868 = vmatmul.mubr.f32.gmra.mrb[0].mxu0 %v1867
        %v1869 = vpop.f32.mrb[0].mxu0
        %v1870 = vadd.f32 %v1770, %v1869
        %v1871 = vpop.f32.mrb[0].mxu0
        %1872 = vmatprep.mubr.f32.mxu0 0.0
        %v1873 = vand.u32 %v195, 4294901760
        %v1874 = vsub.f32 %v195, %v1873
        %v1875 = vand.u32 %v1874, 4294901760
        %1876 = vmatmul.mubr.f32.gmra.mrb[0].mxu0 %v1875
        %v1877 = vpop.f32.mrb[0].mxu0
        %v1878 = vadd.f32 %v1777, %v1877
        %v1879 = vpop.f32.mrb[0].mxu0
        %1880 = vdwg.mxu0
        %1881 = vmatprep.subr.mxu0 0.0
        %v1882 = vand.u32 %v1457, 4294901760
        %v1883 = vsub.f32 %v1457, %v1882
        %v1884 = vand.u32 %v1883, 4294901760
        %1885 = vmatpush1.msra.mxu0 %v1884
        %1886 = vmatprep.subr.mxu0 0.0
        %v1887 = vand.u32 %v1458, 4294901760
        %v1888 = vsub.f32 %v1458, %v1887
        %v1889 = vand.u32 %v1888, 4294901760
        %1890 = vmatpush1.msra.mxu0 %v1889
        %1891 = vmatprep.subr.mxu0 0.0
        %v1892 = vand.u32 %v1459, 4294901760
        %v1893 = vsub.f32 %v1459, %v1892
        %v1894 = vand.u32 %v1893, 4294901760
        %1895 = vmatpush1.msra.mxu0 %v1894
        %1896 = vmatprep.subr.mxu0 0.0
        %v1897 = vand.u32 %v1460, 4294901760
        %v1898 = vsub.f32 %v1460, %v1897
        %v1899 = vand.u32 %v1898, 4294901760
        %1900 = vmatpush1.msra.mxu0 %v1899
        %1901 = vmatprep.subr.mxu0 0.0
        %1902 = vmatpush1.msra.mxu0 0.0
        %1903 = vmatprep.subr.mxu0 0.0
        %1904 = vmatpush1.msra.mxu0 0.0
        %1905 = vmatprep.subr.mxu0 0.0
        %1906 = vmatpush1.msra.mxu0 0.0
        %1907 = vmatprep.subr.mxu0 0.0
        %1908 = vmatpush1.msra.mxu0 0.0
        %1909 = vmatprep.subr.mxu0 0.0
        %1910 = vmatpush1.msra.mxu0 0.0
        %1911 = vmatprep.subr.mxu0 0.0
        %1912 = vmatpush1.msra.mxu0 0.0
        %1913 = vmatprep.subr.mxu0 0.0
        %1914 = vmatpush1.msra.mxu0 0.0
        %1915 = vmatprep.subr.mxu0 0.0
        %1916 = vmatpush1.msra.mxu0 0.0
        %1917 = vmatprep.subr.mxu0 0.0
        %1918 = vmatpush1.msra.mxu0 0.0
        %1919 = vmatprep.subr.mxu0 0.0
        %1920 = vmatpush1.msra.mxu0 0.0
        %1921 = vmatprep.subr.mxu0 0.0
        %1922 = vmatpush1.msra.mxu0 0.0
        %1923 = vmatprep.subr.mxu0 0.0
        %1924 = vmatpush1.msra.mxu0 0.0
        %1925 = vmatprep.subr.mxu0 0.0
        %1926 = vmatpush1.msra.mxu0 0.0
        %1927 = vmatprep.subr.mxu0 0.0
        %1928 = vmatpush1.msra.mxu0 0.0
        %1929 = vmatprep.subr.mxu0 0.0
        %1930 = vmatpush1.msra.mxu0 0.0
        %1931 = vmatprep.subr.mxu0 0.0
        %1932 = vmatpush1.msra.mxu0 0.0
        %1933 = vmatprep.subr.mxu0 0.0
        %1934 = vmatpush1.msra.mxu0 0.0
        %1935 = vmatprep.subr.mxu0 0.0
        %1936 = vmatpush1.msra.mxu0 0.0
        %1937 = vmatprep.subr.mxu0 0.0
        %1938 = vmatpush1.msra.mxu0 0.0
        %1939 = vmatprep.subr.mxu0 0.0
        %1940 = vmatpush1.msra.mxu0 0.0
        %1941 = vmatprep.subr.mxu0 0.0
        %1942 = vmatpush1.msra.mxu0 0.0
        %1943 = vmatprep.subr.mxu0 0.0
        %1944 = vmatpush1.msra.mxu0 0.0
        %1945 = vmatprep.subr.mxu0 0.0
        %1946 = vmatpush1.msra.mxu0 0.0
        %1947 = vmatprep.subr.mxu0 0.0
        %1948 = vmatpush1.msra.mxu0 0.0
        %1949 = vmatprep.subr.mxu0 0.0
        %1950 = vmatpush1.msra.mxu0 0.0
        %1951 = vmatprep.subr.mxu0 0.0
        %1952 = vmatpush1.msra.mxu0 0.0
        %1953 = vmatprep.subr.mxu0 0.0
        %1954 = vmatpush1.msra.mxu0 0.0
        %1955 = vmatprep.subr.mxu0 0.0
        %1956 = vmatpush1.msra.mxu0 0.0
        %1957 = vmatprep.mubr.f32.mxu0 0.0
        %v1958 = vand.u32 %v186, 4294901760
        %1959 = vmatmul.mubr.f32.gmra.mrb[0].mxu0 %v1958
        %v1960 = vpop.f32.mrb[0].mxu0
        %v1961 = vadd.f32 %v1854, %v1960
        %v1962 = vpop.f32.mrb[0].mxu0
        %1963 = vmatprep.mubr.f32.mxu0 0.0
        %v1964 = vand.u32 %v189, 4294901760
        %1965 = vmatmul.mubr.f32.gmra.mrb[0].mxu0 %v1964
        %v1966 = vpop.f32.mrb[0].mxu0
        %v1967 = vadd.f32 %v1862, %v1966
        %v1968 = vpop.f32.mrb[0].mxu0
        %1969 = vmatprep.mubr.f32.mxu0 0.0
        %v1970 = vand.u32 %v192, 4294901760
        %1971 = vmatmul.mubr.f32.gmra.mrb[0].mxu0 %v1970
        %v1972 = vpop.f32.mrb[0].mxu0
        %v1973 = vadd.f32 %v1870, %v1972
        %v1974 = vpop.f32.mrb[0].mxu0
        %1975 = vmatprep.mubr.f32.mxu0 0.0
        %v1976 = vand.u32 %v195, 4294901760
        %1977 = vmatmul.mubr.f32.gmra.mrb[0].mxu0 %v1976
        %v1978 = vpop.f32.mrb[0].mxu0
        %v1979 = vadd.f32 %v1878, %v1978
        %v1980 = vpop.f32.mrb[0].mxu0
        %1981 = vdwg.mxu0
        %1982 = vmatprep.subr.mxu0 0.0
        %v1983 = vand.u32 %v1457, 4294901760
        %1984 = vmatpush1.msra.mxu0 %v1983
        %1985 = vmatprep.subr.mxu0 0.0
        %v1986 = vand.u32 %v1458, 4294901760
        %1987 = vmatpush1.msra.mxu0 %v1986
        %1988 = vmatprep.subr.mxu0 0.0
        %v1989 = vand.u32 %v1459, 4294901760
        %1990 = vmatpush1.msra.mxu0 %v1989
        %1991 = vmatprep.subr.mxu0 0.0
        %v1992 = vand.u32 %v1460, 4294901760
        %1993 = vmatpush1.msra.mxu0 %v1992
        %1994 = vmatprep.subr.mxu0 0.0
        %1995 = vmatpush1.msra.mxu0 0.0
        %1996 = vmatprep.subr.mxu0 0.0
        %1997 = vmatpush1.msra.mxu0 0.0
        %1998 = vmatprep.subr.mxu0 0.0
        %1999 = vmatpush1.msra.mxu0 0.0
        %2000 = vmatprep.subr.mxu0 0.0
        %2001 = vmatpush1.msra.mxu0 0.0
        %2002 = vmatprep.subr.mxu0 0.0
        %2003 = vmatpush1.msra.mxu0 0.0
        %2004 = vmatprep.subr.mxu0 0.0
        %2005 = vmatpush1.msra.mxu0 0.0
        %2006 = vmatprep.subr.mxu0 0.0
        %2007 = vmatpush1.msra.mxu0 0.0
        %2008 = vmatprep.subr.mxu0 0.0
        %2009 = vmatpush1.msra.mxu0 0.0
        %2010 = vmatprep.subr.mxu0 0.0
        %2011 = vmatpush1.msra.mxu0 0.0
        %2012 = vmatprep.subr.mxu0 0.0
        %2013 = vmatpush1.msra.mxu0 0.0
        %2014 = vmatprep.subr.mxu0 0.0
        %2015 = vmatpush1.msra.mxu0 0.0
        %2016 = vmatprep.subr.mxu0 0.0
        %2017 = vmatpush1.msra.mxu0 0.0
        %2018 = vmatprep.subr.mxu0 0.0
        %2019 = vmatpush1.msra.mxu0 0.0
        %2020 = vmatprep.subr.mxu0 0.0
        %2021 = vmatpush1.msra.mxu0 0.0
        %2022 = vmatprep.subr.mxu0 0.0
        %2023 = vmatpush1.msra.mxu0 0.0
        %2024 = vmatprep.subr.mxu0 0.0
        %2025 = vmatpush1.msra.mxu0 0.0
        %2026 = vmatprep.subr.mxu0 0.0
        %2027 = vmatpush1.msra.mxu0 0.0
        %2028 = vmatprep.subr.mxu0 0.0
        %2029 = vmatpush1.msra.mxu0 0.0
        %2030 = vmatprep.subr.mxu0 0.0
        %2031 = vmatpush1.msra.mxu0 0.0
        %2032 = vmatprep.subr.mxu0 0.0
        %2033 = vmatpush1.msra.mxu0 0.0
        %2034 = vmatprep.subr.mxu0 0.0
        %2035 = vmatpush1.msra.mxu0 0.0
        %2036 = vmatprep.subr.mxu0 0.0
        %2037 = vmatpush1.msra.mxu0 0.0
        %2038 = vmatprep.subr.mxu0 0.0
        %2039 = vmatpush1.msra.mxu0 0.0
        %2040 = vmatprep.subr.mxu0 0.0
        %2041 = vmatpush1.msra.mxu0 0.0
        %2042 = vmatprep.subr.mxu0 0.0
        %2043 = vmatpush1.msra.mxu0 0.0
        %2044 = vmatprep.subr.mxu0 0.0
        %2045 = vmatpush1.msra.mxu0 0.0
        %2046 = vmatprep.subr.mxu0 0.0
        %2047 = vmatpush1.msra.mxu0 0.0
        %2048 = vmatprep.subr.mxu0 0.0
        %2049 = vmatpush1.msra.mxu0 0.0
        %2050 = vmatprep.mubr.f32.mxu0 0.0
        %v2051 = vand.u32 %v186, 4294901760
        %2052 = vmatmul.mubr.f32.gmra.mrb[0].mxu0 %v2051
        %v2053 = vpop.f32.mrb[0].mxu0
        %v2054 = vadd.f32 %v1961, %v2053
        %v2055 = vpop.f32.mrb[0].mxu0
        %2056 = vmatprep.mubr.f32.mxu0 0.0
        %v2057 = vand.u32 %v189, 4294901760
        %2058 = vmatmul.mubr.f32.gmra.mrb[0].mxu0 %v2057
        %v2059 = vpop.f32.mrb[0].mxu0
        %v2060 = vadd.f32 %v1967, %v2059
        %v2061 = vpop.f32.mrb[0].mxu0
        %2062 = vmatprep.mubr.f32.mxu0 0.0
        %v2063 = vand.u32 %v192, 4294901760
        %2064 = vmatmul.mubr.f32.gmra.mrb[0].mxu0 %v2063
        %v2065 = vpop.f32.mrb[0].mxu0
        %v2066 = vadd.f32 %v1973, %v2065
        %v2067 = vpop.f32.mrb[0].mxu0
        %2068 = vmatprep.mubr.f32.mxu0 0.0
        %v2069 = vand.u32 %v195, 4294901760
        %2070 = vmatmul.mubr.f32.gmra.mrb[0].mxu0 %v2069
        %v2071 = vpop.f32.mrb[0].mxu0
        %v2072 = vadd.f32 %v1979, %v2071
        %v2073 = vpop.f32.mrb[0].mxu0
        %2074 = vdwg.mxu0
        %s2075 = scalar_lea.vmem %s159, 64
        %2076 = vst.msk [vmem:[%s2075] sm:$0xff] %vm811, %v2054
        %2077 = vst.msk [vmem:[%s2075 + $0x8] sm:$0xff] %vm811, %v2060
        %2078 = vst.msk [vmem:[%s2075 + $0x10] sm:$0xff] %vm811, %v2066
        %2079 = vst.msk [vmem:[%s2075 + $0x18] sm:$0xff] %vm811, %v2072
        %v2080 = vadd.s32 %v1448, 1
        %vm2081 = vcmp.eq.s32.totalorder %v165, %v2080
        %vm2082 = vcmp.eq.s32.totalorder %v166, %v2080
        %vm2083 = vcmp.eq.s32.totalorder %v167, %v2080
        %vm2084 = vcmp.eq.s32.totalorder %v168, %v2080
        %v2085 = vsel %vm2081, 1, 0
        %v2086 = vsel %vm2082, 1, 0
        %v2087 = vsel %vm2083, 1, 0
        %v2088 = vsel %vm2084, 1, 0
        %v2089 = vcvt.s32.f32 %v2085
        %v2090 = vcvt.s32.f32 %v2086
        %v2091 = vcvt.s32.f32 %v2087
        %v2092 = vcvt.s32.f32 %v2088
        %2093 = vmatprep.subr.mxu0 0.0
        %v2094 = vand.u32 %v2089, 4294901760
        %2095 = vmatpush1.msra.mxu0 %v2094
        %2096 = vmatprep.subr.mxu0 0.0
        %v2097 = vand.u32 %v2090, 4294901760
        %2098 = vmatpush1.msra.mxu0 %v2097
        %2099 = vmatprep.subr.mxu0 0.0
        %v2100 = vand.u32 %v2091, 4294901760
        %2101 = vmatpush1.msra.mxu0 %v2100
        %2102 = vmatprep.subr.mxu0 0.0
        %v2103 = vand.u32 %v2092, 4294901760
        %2104 = vmatpush1.msra.mxu0 %v2103
        %2105 = vmatprep.subr.mxu0 0.0
        %2106 = vmatpush1.msra.mxu0 0.0
        %2107 = vmatprep.subr.mxu0 0.0
        %2108 = vmatpush1.msra.mxu0 0.0
        %2109 = vmatprep.subr.mxu0 0.0
        %2110 = vmatpush1.msra.mxu0 0.0
        %2111 = vmatprep.subr.mxu0 0.0
        %2112 = vmatpush1.msra.mxu0 0.0
        %2113 = vmatprep.subr.mxu0 0.0
        %2114 = vmatpush1.msra.mxu0 0.0
        %2115 = vmatprep.subr.mxu0 0.0
        %2116 = vmatpush1.msra.mxu0 0.0
        %2117 = vmatprep.subr.mxu0 0.0
        %2118 = vmatpush1.msra.mxu0 0.0
        %2119 = vmatprep.subr.mxu0 0.0
        %2120 = vmatpush1.msra.mxu0 0.0
        %2121 = vmatprep.subr.mxu0 0.0
        %2122 = vmatpush1.msra.mxu0 0.0
        %2123 = vmatprep.subr.mxu0 0.0
        %2124 = vmatpush1.msra.mxu0 0.0
        %2125 = vmatprep.subr.mxu0 0.0
        %2126 = vmatpush1.msra.mxu0 0.0
        %2127 = vmatprep.subr.mxu0 0.0
        %2128 = vmatpush1.msra.mxu0 0.0
        %2129 = vmatprep.subr.mxu0 0.0
        %2130 = vmatpush1.msra.mxu0 0.0
        %2131 = vmatprep.subr.mxu0 0.0
        %2132 = vmatpush1.msra.mxu0 0.0
        %2133 = vmatprep.subr.mxu0 0.0
        %2134 = vmatpush1.msra.mxu0 0.0
        %2135 = vmatprep.subr.mxu0 0.0
        %2136 = vmatpush1.msra.mxu0 0.0
        %2137 = vmatprep.subr.mxu0 0.0
        %2138 = vmatpush1.msra.mxu0 0.0
        %2139 = vmatprep.subr.mxu0 0.0
        %2140 = vmatpush1.msra.mxu0 0.0
        %2141 = vmatprep.subr.mxu0 0.0
        %2142 = vmatpush1.msra.mxu0 0.0
        %2143 = vmatprep.subr.mxu0 0.0
        %2144 = vmatpush1.msra.mxu0 0.0
        %2145 = vmatprep.subr.mxu0 0.0
        %2146 = vmatpush1.msra.mxu0 0.0
        %2147 = vmatprep.subr.mxu0 0.0
        %2148 = vmatpush1.msra.mxu0 0.0
        %2149 = vmatprep.subr.mxu0 0.0
        %2150 = vmatpush1.msra.mxu0 0.0
        %2151 = vmatprep.subr.mxu0 0.0
        %2152 = vmatpush1.msra.mxu0 0.0
        %2153 = vmatprep.subr.mxu0 0.0
        %2154 = vmatpush1.msra.mxu0 0.0
        %2155 = vmatprep.subr.mxu0 0.0
        %2156 = vmatpush1.msra.mxu0 0.0
        %2157 = vmatprep.subr.mxu0 0.0
        %2158 = vmatpush1.msra.mxu0 0.0
        %2159 = vmatprep.subr.mxu0 0.0
        %2160 = vmatpush1.msra.mxu0 0.0
        %2161 = vmatprep.mubr.f32.mxu0 0.0
        %v2162 = vand.u32 %v186, 4294901760
        %v2163 = vsub.f32 %v186, %v2162
        %v2164 = vand.u32 %v2163, 4294901760
        %v2165 = vsub.f32 %v2163, %v2164
        %v2166 = vand.u32 %v2165, 4294901760
        %2167 = vmatmul.mubr.f32.gmra.mrb[0].mxu0 %v2166
        %v2168 = vpop.f32.mrb[0].mxu0
        %v2169 = vadd.f32 0.0, %v2168
        %v2170 = vpop.f32.mrb[0].mxu0
        %2171 = vmatprep.mubr.f32.mxu0 0.0
        %v2172 = vand.u32 %v189, 4294901760
        %v2173 = vsub.f32 %v189, %v2172
        %v2174 = vand.u32 %v2173, 4294901760
        %v2175 = vsub.f32 %v2173, %v2174
        %v2176 = vand.u32 %v2175, 4294901760
        %2177 = vmatmul.mubr.f32.gmra.mrb[0].mxu0 %v2176
        %v2178 = vpop.f32.mrb[0].mxu0
        %v2179 = vadd.f32 0.0, %v2178
        %v2180 = vpop.f32.mrb[0].mxu0
        %2181 = vmatprep.mubr.f32.mxu0 0.0
        %v2182 = vand.u32 %v192, 4294901760
        %v2183 = vsub.f32 %v192, %v2182
        %v2184 = vand.u32 %v2183, 4294901760
        %v2185 = vsub.f32 %v2183, %v2184
        %v2186 = vand.u32 %v2185, 4294901760
        %2187 = vmatmul.mubr.f32.gmra.mrb[0].mxu0 %v2186
        %v2188 = vpop.f32.mrb[0].mxu0
        %v2189 = vadd.f32 0.0, %v2188
        %v2190 = vpop.f32.mrb[0].mxu0
        %2191 = vmatprep.mubr.f32.mxu0 0.0
        %v2192 = vand.u32 %v195, 4294901760
        %v2193 = vsub.f32 %v195, %v2192
        %v2194 = vand.u32 %v2193, 4294901760
        %v2195 = vsub.f32 %v2193, %v2194
        %v2196 = vand.u32 %v2195, 4294901760
        %2197 = vmatmul.mubr.f32.gmra.mrb[0].mxu0 %v2196
        %v2198 = vpop.f32.mrb[0].mxu0
        %v2199 = vadd.f32 0.0, %v2198
        %v2200 = vpop.f32.mrb[0].mxu0
        %2201 = vdwg.mxu0
        %2202 = vmatprep.subr.mxu0 0.0
        %v2203 = vand.u32 %v2089, 4294901760
        %v2204 = vsub.f32 %v2089, %v2203
        %v2205 = vand.u32 %v2204, 4294901760
        %v2206 = vsub.f32 %v2204, %v2205
        %v2207 = vand.u32 %v2206, 4294901760
        %2208 = vmatpush1.msra.mxu0 %v2207
        %2209 = vmatprep.subr.mxu0 0.0
        %v2210 = vand.u32 %v2090, 4294901760
        %v2211 = vsub.f32 %v2090, %v2210
        %v2212 = vand.u32 %v2211, 4294901760
        %v2213 = vsub.f32 %v2211, %v2212
        %v2214 = vand.u32 %v2213, 4294901760
        %2215 = vmatpush1.msra.mxu0 %v2214
        %2216 = vmatprep.subr.mxu0 0.0
        %v2217 = vand.u32 %v2091, 4294901760
        %v2218 = vsub.f32 %v2091, %v2217
        %v2219 = vand.u32 %v2218, 4294901760
        %v2220 = vsub.f32 %v2218, %v2219
        %v2221 = vand.u32 %v2220, 4294901760
        %2222 = vmatpush1.msra.mxu0 %v2221
        %2223 = vmatprep.subr.mxu0 0.0
        %v2224 = vand.u32 %v2092, 4294901760
        %v2225 = vsub.f32 %v2092, %v2224
        %v2226 = vand.u32 %v2225, 4294901760
        %v2227 = vsub.f32 %v2225, %v2226
        %v2228 = vand.u32 %v2227, 4294901760
        %2229 = vmatpush1.msra.mxu0 %v2228
        %2230 = vmatprep.subr.mxu0 0.0
        %2231 = vmatpush1.msra.mxu0 0.0
        %2232 = vmatprep.subr.mxu0 0.0
        %2233 = vmatpush1.msra.mxu0 0.0
        %2234 = vmatprep.subr.mxu0 0.0
        %2235 = vmatpush1.msra.mxu0 0.0
        %2236 = vmatprep.subr.mxu0 0.0
        %2237 = vmatpush1.msra.mxu0 0.0
        %2238 = vmatprep.subr.mxu0 0.0
        %2239 = vmatpush1.msra.mxu0 0.0
        %2240 = vmatprep.subr.mxu0 0.0
        %2241 = vmatpush1.msra.mxu0 0.0
        %2242 = vmatprep.subr.mxu0 0.0
        %2243 = vmatpush1.msra.mxu0 0.0
        %2244 = vmatprep.subr.mxu0 0.0
        %2245 = vmatpush1.msra.mxu0 0.0
        %2246 = vmatprep.subr.mxu0 0.0
        %2247 = vmatpush1.msra.mxu0 0.0
        %2248 = vmatprep.subr.mxu0 0.0
        %2249 = vmatpush1.msra.mxu0 0.0
        %2250 = vmatprep.subr.mxu0 0.0
        %2251 = vmatpush1.msra.mxu0 0.0
        %2252 = vmatprep.subr.mxu0 0.0
        %2253 = vmatpush1.msra.mxu0 0.0
        %2254 = vmatprep.subr.mxu0 0.0
        %2255 = vmatpush1.msra.mxu0 0.0
        %2256 = vmatprep.subr.mxu0 0.0
        %2257 = vmatpush1.msra.mxu0 0.0
        %2258 = vmatprep.subr.mxu0 0.0
        %2259 = vmatpush1.msra.mxu0 0.0
        %2260 = vmatprep.subr.mxu0 0.0
        %2261 = vmatpush1.msra.mxu0 0.0
        %2262 = vmatprep.subr.mxu0 0.0
        %2263 = vmatpush1.msra.mxu0 0.0
        %2264 = vmatprep.subr.mxu0 0.0
        %2265 = vmatpush1.msra.mxu0 0.0
        %2266 = vmatprep.subr.mxu0 0.0
        %2267 = vmatpush1.msra.mxu0 0.0
        %2268 = vmatprep.subr.mxu0 0.0
        %2269 = vmatpush1.msra.mxu0 0.0
        %2270 = vmatprep.subr.mxu0 0.0
        %2271 = vmatpush1.msra.mxu0 0.0
        %2272 = vmatprep.subr.mxu0 0.0
        %2273 = vmatpush1.msra.mxu0 0.0
        %2274 = vmatprep.subr.mxu0 0.0
        %2275 = vmatpush1.msra.mxu0 0.0
        %2276 = vmatprep.subr.mxu0 0.0
        %2277 = vmatpush1.msra.mxu0 0.0
        %2278 = vmatprep.subr.mxu0 0.0
        %2279 = vmatpush1.msra.mxu0 0.0
        %2280 = vmatprep.subr.mxu0 0.0
        %2281 = vmatpush1.msra.mxu0 0.0
        %2282 = vmatprep.subr.mxu0 0.0
        %2283 = vmatpush1.msra.mxu0 0.0
        %2284 = vmatprep.subr.mxu0 0.0
        %2285 = vmatpush1.msra.mxu0 0.0
        %2286 = vmatprep.mubr.f32.mxu0 0.0
        %v2287 = vand.u32 %v186, 4294901760
        %2288 = vmatmul.mubr.f32.gmra.mrb[0].mxu0 %v2287
        %v2289 = vpop.f32.mrb[0].mxu0
        %v2290 = vadd.f32 %v2169, %v2289
        %v2291 = vpop.f32.mrb[0].mxu0
        %2292 = vmatprep.mubr.f32.mxu0 0.0
        %v2293 = vand.u32 %v189, 4294901760
        %2294 = vmatmul.mubr.f32.gmra.mrb[0].mxu0 %v2293
        %v2295 = vpop.f32.mrb[0].mxu0
        %v2296 = vadd.f32 %v2179, %v2295
        %v2297 = vpop.f32.mrb[0].mxu0
        %2298 = vmatprep.mubr.f32.mxu0 0.0
        %v2299 = vand.u32 %v192, 4294901760
        %2300 = vmatmul.mubr.f32.gmra.mrb[0].mxu0 %v2299
        %v2301 = vpop.f32.mrb[0].mxu0
        %v2302 = vadd.f32 %v2189, %v2301
        %v2303 = vpop.f32.mrb[0].mxu0
        %2304 = vmatprep.mubr.f32.mxu0 0.0
        %v2305 = vand.u32 %v195, 4294901760
        %2306 = vmatmul.mubr.f32.gmra.mrb[0].mxu0 %v2305
        %v2307 = vpop.f32.mrb[0].mxu0
        %v2308 = vadd.f32 %v2199, %v2307
        %v2309 = vpop.f32.mrb[0].mxu0
        %2310 = vdwg.mxu0
        %2311 = vmatprep.subr.mxu0 0.0
        %v2312 = vand.u32 %v2089, 4294901760
        %v2313 = vsub.f32 %v2089, %v2312
        %2314 = vmatpush1.msra.mxu0 %v2313
        %2315 = vmatprep.subr.mxu0 0.0
        %v2316 = vand.u32 %v2090, 4294901760
        %v2317 = vsub.f32 %v2090, %v2316
        %2318 = vmatpush1.msra.mxu0 %v2317
        %2319 = vmatprep.subr.mxu0 0.0
        %v2320 = vand.u32 %v2091, 4294901760
        %v2321 = vsub.f32 %v2091, %v2320
        %2322 = vmatpush1.msra.mxu0 %v2321
        %2323 = vmatprep.subr.mxu0 0.0
        %v2324 = vand.u32 %v2092, 4294901760
        %v2325 = vsub.f32 %v2092, %v2324
        %2326 = vmatpush1.msra.mxu0 %v2325
        %2327 = vmatprep.subr.mxu0 0.0
        %2328 = vmatpush1.msra.mxu0 0.0
        %2329 = vmatprep.subr.mxu0 0.0
        %2330 = vmatpush1.msra.mxu0 0.0
        %2331 = vmatprep.subr.mxu0 0.0
        %2332 = vmatpush1.msra.mxu0 0.0
        %2333 = vmatprep.subr.mxu0 0.0
        %2334 = vmatpush1.msra.mxu0 0.0
        %2335 = vmatprep.subr.mxu0 0.0
        %2336 = vmatpush1.msra.mxu0 0.0
        %2337 = vmatprep.subr.mxu0 0.0
        %2338 = vmatpush1.msra.mxu0 0.0
        %2339 = vmatprep.subr.mxu0 0.0
        %2340 = vmatpush1.msra.mxu0 0.0
        %2341 = vmatprep.subr.mxu0 0.0
        %2342 = vmatpush1.msra.mxu0 0.0
        %2343 = vmatprep.subr.mxu0 0.0
        %2344 = vmatpush1.msra.mxu0 0.0
        %2345 = vmatprep.subr.mxu0 0.0
        %2346 = vmatpush1.msra.mxu0 0.0
        %2347 = vmatprep.subr.mxu0 0.0
        %2348 = vmatpush1.msra.mxu0 0.0
        %2349 = vmatprep.subr.mxu0 0.0
        %2350 = vmatpush1.msra.mxu0 0.0
        %2351 = vmatprep.subr.mxu0 0.0
        %2352 = vmatpush1.msra.mxu0 0.0
        %2353 = vmatprep.subr.mxu0 0.0
        %2354 = vmatpush1.msra.mxu0 0.0
        %2355 = vmatprep.subr.mxu0 0.0
        %2356 = vmatpush1.msra.mxu0 0.0
        %2357 = vmatprep.subr.mxu0 0.0
        %2358 = vmatpush1.msra.mxu0 0.0
        %2359 = vmatprep.subr.mxu0 0.0
        %2360 = vmatpush1.msra.mxu0 0.0
        %2361 = vmatprep.subr.mxu0 0.0
        %2362 = vmatpush1.msra.mxu0 0.0
        %2363 = vmatprep.subr.mxu0 0.0
        %2364 = vmatpush1.msra.mxu0 0.0
        %2365 = vmatprep.subr.mxu0 0.0
        %2366 = vmatpush1.msra.mxu0 0.0
        %2367 = vmatprep.subr.mxu0 0.0
        %2368 = vmatpush1.msra.mxu0 0.0
        %2369 = vmatprep.subr.mxu0 0.0
        %2370 = vmatpush1.msra.mxu0 0.0
        %2371 = vmatprep.subr.mxu0 0.0
        %2372 = vmatpush1.msra.mxu0 0.0
        %2373 = vmatprep.subr.mxu0 0.0
        %2374 = vmatpush1.msra.mxu0 0.0
        %2375 = vmatprep.subr.mxu0 0.0
        %2376 = vmatpush1.msra.mxu0 0.0
        %2377 = vmatprep.subr.mxu0 0.0
        %2378 = vmatpush1.msra.mxu0 0.0
        %2379 = vmatprep.subr.mxu0 0.0
        %2380 = vmatpush1.msra.mxu0 0.0
        %2381 = vmatprep.subr.mxu0 0.0
        %2382 = vmatpush1.msra.mxu0 0.0
        %2383 = vmatprep.mubr.f32.mxu0 0.0
        %v2384 = vand.u32 %v186, 4294901760
        %v2385 = vsub.f32 %v186, %v2384
        %2386 = vmatmul.mubr.f32.gmra.mrb[0].mxu0 %v2385
        %v2387 = vpop.f32.mrb[0].mxu0
        %v2388 = vadd.f32 %v2290, %v2387
        %v2389 = vpop.f32.mrb[0].mxu0
        %2390 = vmatprep.mubr.f32.mxu0 0.0
        %v2391 = vand.u32 %v189, 4294901760
        %v2392 = vsub.f32 %v189, %v2391
        %2393 = vmatmul.mubr.f32.gmra.mrb[0].mxu0 %v2392
        %v2394 = vpop.f32.mrb[0].mxu0
        %v2395 = vadd.f32 %v2296, %v2394
        %v2396 = vpop.f32.mrb[0].mxu0
        %2397 = vmatprep.mubr.f32.mxu0 0.0
        %v2398 = vand.u32 %v192, 4294901760
        %v2399 = vsub.f32 %v192, %v2398
        %2400 = vmatmul.mubr.f32.gmra.mrb[0].mxu0 %v2399
        %v2401 = vpop.f32.mrb[0].mxu0
        %v2402 = vadd.f32 %v2302, %v2401
        %v2403 = vpop.f32.mrb[0].mxu0
        %2404 = vmatprep.mubr.f32.mxu0 0.0
        %v2405 = vand.u32 %v195, 4294901760
        %v2406 = vsub.f32 %v195, %v2405
        %2407 = vmatmul.mubr.f32.gmra.mrb[0].mxu0 %v2406
        %v2408 = vpop.f32.mrb[0].mxu0
        %v2409 = vadd.f32 %v2308, %v2408
        %v2410 = vpop.f32.mrb[0].mxu0
        %2411 = vdwg.mxu0
        %2412 = vmatprep.subr.mxu0 0.0
        %v2413 = vand.u32 %v2089, 4294901760
        %2414 = vmatpush1.msra.mxu0 %v2413
        %2415 = vmatprep.subr.mxu0 0.0
        %v2416 = vand.u32 %v2090, 4294901760
        %2417 = vmatpush1.msra.mxu0 %v2416
        %2418 = vmatprep.subr.mxu0 0.0
        %v2419 = vand.u32 %v2091, 4294901760
        %2420 = vmatpush1.msra.mxu0 %v2419
        %2421 = vmatprep.subr.mxu0 0.0
        %v2422 = vand.u32 %v2092, 4294901760
        %2423 = vmatpush1.msra.mxu0 %v2422
        %2424 = vmatprep.subr.mxu0 0.0
        %2425 = vmatpush1.msra.mxu0 0.0
        %2426 = vmatprep.subr.mxu0 0.0
        %2427 = vmatpush1.msra.mxu0 0.0
        %2428 = vmatprep.subr.mxu0 0.0
        %2429 = vmatpush1.msra.mxu0 0.0
        %2430 = vmatprep.subr.mxu0 0.0
        %2431 = vmatpush1.msra.mxu0 0.0
        %2432 = vmatprep.subr.mxu0 0.0
        %2433 = vmatpush1.msra.mxu0 0.0
        %2434 = vmatprep.subr.mxu0 0.0
        %2435 = vmatpush1.msra.mxu0 0.0
        %2436 = vmatprep.subr.mxu0 0.0
        %2437 = vmatpush1.msra.mxu0 0.0
        %2438 = vmatprep.subr.mxu0 0.0
        %2439 = vmatpush1.msra.mxu0 0.0
        %2440 = vmatprep.subr.mxu0 0.0
        %2441 = vmatpush1.msra.mxu0 0.0
        %2442 = vmatprep.subr.mxu0 0.0
        %2443 = vmatpush1.msra.mxu0 0.0
        %2444 = vmatprep.subr.mxu0 0.0
        %2445 = vmatpush1.msra.mxu0 0.0
        %2446 = vmatprep.subr.mxu0 0.0
        %2447 = vmatpush1.msra.mxu0 0.0
        %2448 = vmatprep.subr.mxu0 0.0
        %2449 = vmatpush1.msra.mxu0 0.0
        %2450 = vmatprep.subr.mxu0 0.0
        %2451 = vmatpush1.msra.mxu0 0.0
        %2452 = vmatprep.subr.mxu0 0.0
        %2453 = vmatpush1.msra.mxu0 0.0
        %2454 = vmatprep.subr.mxu0 0.0
        %2455 = vmatpush1.msra.mxu0 0.0
        %2456 = vmatprep.subr.mxu0 0.0
        %2457 = vmatpush1.msra.mxu0 0.0
        %2458 = vmatprep.subr.mxu0 0.0
        %2459 = vmatpush1.msra.mxu0 0.0
        %2460 = vmatprep.subr.mxu0 0.0
        %2461 = vmatpush1.msra.mxu0 0.0
        %2462 = vmatprep.subr.mxu0 0.0
        %2463 = vmatpush1.msra.mxu0 0.0
        %2464 = vmatprep.subr.mxu0 0.0
        %2465 = vmatpush1.msra.mxu0 0.0
        %2466 = vmatprep.subr.mxu0 0.0
        %2467 = vmatpush1.msra.mxu0 0.0
        %2468 = vmatprep.subr.mxu0 0.0
        %2469 = vmatpush1.msra.mxu0 0.0
        %2470 = vmatprep.subr.mxu0 0.0
        %2471 = vmatpush1.msra.mxu0 0.0
        %2472 = vmatprep.subr.mxu0 0.0
        %2473 = vmatpush1.msra.mxu0 0.0
        %2474 = vmatprep.subr.mxu0 0.0
        %2475 = vmatpush1.msra.mxu0 0.0
        %2476 = vmatprep.subr.mxu0 0.0
        %2477 = vmatpush1.msra.mxu0 0.0
        %2478 = vmatprep.subr.mxu0 0.0
        %2479 = vmatpush1.msra.mxu0 0.0
        %2480 = vmatprep.mubr.f32.mxu0 0.0
        %v2481 = vand.u32 %v186, 4294901760
        %v2482 = vsub.f32 %v186, %v2481
        %v2483 = vand.u32 %v2482, 4294901760
        %2484 = vmatmul.mubr.f32.gmra.mrb[0].mxu0 %v2483
        %v2485 = vpop.f32.mrb[0].mxu0
        %v2486 = vadd.f32 %v2388, %v2485
        %v2487 = vpop.f32.mrb[0].mxu0
        %2488 = vmatprep.mubr.f32.mxu0 0.0
        %v2489 = vand.u32 %v189, 4294901760
        %v2490 = vsub.f32 %v189, %v2489
        %v2491 = vand.u32 %v2490, 4294901760
        %2492 = vmatmul.mubr.f32.gmra.mrb[0].mxu0 %v2491
        %v2493 = vpop.f32.mrb[0].mxu0
        %v2494 = vadd.f32 %v2395, %v2493
        %v2495 = vpop.f32.mrb[0].mxu0
        %2496 = vmatprep.mubr.f32.mxu0 0.0
        %v2497 = vand.u32 %v192, 4294901760
        %v2498 = vsub.f32 %v192, %v2497
        %v2499 = vand.u32 %v2498, 4294901760
        %2500 = vmatmul.mubr.f32.gmra.mrb[0].mxu0 %v2499
        %v2501 = vpop.f32.mrb[0].mxu0
        %v2502 = vadd.f32 %v2402, %v2501
        %v2503 = vpop.f32.mrb[0].mxu0
        %2504 = vmatprep.mubr.f32.mxu0 0.0
        %v2505 = vand.u32 %v195, 4294901760
        %v2506 = vsub.f32 %v195, %v2505
        %v2507 = vand.u32 %v2506, 4294901760
        %2508 = vmatmul.mubr.f32.gmra.mrb[0].mxu0 %v2507
        %v2509 = vpop.f32.mrb[0].mxu0
        %v2510 = vadd.f32 %v2409, %v2509
        %v2511 = vpop.f32.mrb[0].mxu0
        %2512 = vdwg.mxu0
        %2513 = vmatprep.subr.mxu0 0.0
        %v2514 = vand.u32 %v2089, 4294901760
        %v2515 = vsub.f32 %v2089, %v2514
        %v2516 = vand.u32 %v2515, 4294901760
        %2517 = vmatpush1.msra.mxu0 %v2516
        %2518 = vmatprep.subr.mxu0 0.0
        %v2519 = vand.u32 %v2090, 4294901760
        %v2520 = vsub.f32 %v2090, %v2519
        %v2521 = vand.u32 %v2520, 4294901760
        %2522 = vmatpush1.msra.mxu0 %v2521
        %2523 = vmatprep.subr.mxu0 0.0
        %v2524 = vand.u32 %v2091, 4294901760
        %v2525 = vsub.f32 %v2091, %v2524
        %v2526 = vand.u32 %v2525, 4294901760
        %2527 = vmatpush1.msra.mxu0 %v2526
        %2528 = vmatprep.subr.mxu0 0.0
        %v2529 = vand.u32 %v2092, 4294901760
        %v2530 = vsub.f32 %v2092, %v2529
        %v2531 = vand.u32 %v2530, 4294901760
        %2532 = vmatpush1.msra.mxu0 %v2531
        %2533 = vmatprep.subr.mxu0 0.0
        %2534 = vmatpush1.msra.mxu0 0.0
        %2535 = vmatprep.subr.mxu0 0.0
        %2536 = vmatpush1.msra.mxu0 0.0
        %2537 = vmatprep.subr.mxu0 0.0
        %2538 = vmatpush1.msra.mxu0 0.0
        %2539 = vmatprep.subr.mxu0 0.0
        %2540 = vmatpush1.msra.mxu0 0.0
        %2541 = vmatprep.subr.mxu0 0.0
        %2542 = vmatpush1.msra.mxu0 0.0
        %2543 = vmatprep.subr.mxu0 0.0
        %2544 = vmatpush1.msra.mxu0 0.0
        %2545 = vmatprep.subr.mxu0 0.0
        %2546 = vmatpush1.msra.mxu0 0.0
        %2547 = vmatprep.subr.mxu0 0.0
        %2548 = vmatpush1.msra.mxu0 0.0
        %2549 = vmatprep.subr.mxu0 0.0
        %2550 = vmatpush1.msra.mxu0 0.0
        %2551 = vmatprep.subr.mxu0 0.0
        %2552 = vmatpush1.msra.mxu0 0.0
        %2553 = vmatprep.subr.mxu0 0.0
        %2554 = vmatpush1.msra.mxu0 0.0
        %2555 = vmatprep.subr.mxu0 0.0
        %2556 = vmatpush1.msra.mxu0 0.0
        %2557 = vmatprep.subr.mxu0 0.0
        %2558 = vmatpush1.msra.mxu0 0.0
        %2559 = vmatprep.subr.mxu0 0.0
        %2560 = vmatpush1.msra.mxu0 0.0
        %2561 = vmatprep.subr.mxu0 0.0
        %2562 = vmatpush1.msra.mxu0 0.0
        %2563 = vmatprep.subr.mxu0 0.0
        %2564 = vmatpush1.msra.mxu0 0.0
        %2565 = vmatprep.subr.mxu0 0.0
        %2566 = vmatpush1.msra.mxu0 0.0
        %2567 = vmatprep.subr.mxu0 0.0
        %2568 = vmatpush1.msra.mxu0 0.0
        %2569 = vmatprep.subr.mxu0 0.0
        %2570 = vmatpush1.msra.mxu0 0.0
        %2571 = vmatprep.subr.mxu0 0.0
        %2572 = vmatpush1.msra.mxu0 0.0
        %2573 = vmatprep.subr.mxu0 0.0
        %2574 = vmatpush1.msra.mxu0 0.0
        %2575 = vmatprep.subr.mxu0 0.0
        %2576 = vmatpush1.msra.mxu0 0.0
        %2577 = vmatprep.subr.mxu0 0.0
        %2578 = vmatpush1.msra.mxu0 0.0
        %2579 = vmatprep.subr.mxu0 0.0
        %2580 = vmatpush1.msra.mxu0 0.0
        %2581 = vmatprep.subr.mxu0 0.0
        %2582 = vmatpush1.msra.mxu0 0.0
        %2583 = vmatprep.subr.mxu0 0.0
        %2584 = vmatpush1.msra.mxu0 0.0
        %2585 = vmatprep.subr.mxu0 0.0
        %2586 = vmatpush1.msra.mxu0 0.0
        %2587 = vmatprep.subr.mxu0 0.0
        %2588 = vmatpush1.msra.mxu0 0.0
        %2589 = vmatprep.mubr.f32.mxu0 0.0
        %v2590 = vand.u32 %v186, 4294901760
        %2591 = vmatmul.mubr.f32.gmra.mrb[0].mxu0 %v2590
        %v2592 = vpop.f32.mrb[0].mxu0
        %v2593 = vadd.f32 %v2486, %v2592
        %v2594 = vpop.f32.mrb[0].mxu0
        %2595 = vmatprep.mubr.f32.mxu0 0.0
        %v2596 = vand.u32 %v189, 4294901760
        %2597 = vmatmul.mubr.f32.gmra.mrb[0].mxu0 %v2596
        %v2598 = vpop.f32.mrb[0].mxu0
        %v2599 = vadd.f32 %v2494, %v2598
        %v2600 = vpop.f32.mrb[0].mxu0
        %2601 = vmatprep.mubr.f32.mxu0 0.0
        %v2602 = vand.u32 %v192, 4294901760
        %2603 = vmatmul.mubr.f32.gmra.mrb[0].mxu0 %v2602
        %v2604 = vpop.f32.mrb[0].mxu0
        %v2605 = vadd.f32 %v2502, %v2604
        %v2606 = vpop.f32.mrb[0].mxu0
        %2607 = vmatprep.mubr.f32.mxu0 0.0
        %v2608 = vand.u32 %v195, 4294901760
        %2609 = vmatmul.mubr.f32.gmra.mrb[0].mxu0 %v2608
        %v2610 = vpop.f32.mrb[0].mxu0
        %v2611 = vadd.f32 %v2510, %v2610
        %v2612 = vpop.f32.mrb[0].mxu0
        %2613 = vdwg.mxu0
        %2614 = vmatprep.subr.mxu0 0.0
        %v2615 = vand.u32 %v2089, 4294901760
        %2616 = vmatpush1.msra.mxu0 %v2615
        %2617 = vmatprep.subr.mxu0 0.0
        %v2618 = vand.u32 %v2090, 4294901760
        %2619 = vmatpush1.msra.mxu0 %v2618
        %2620 = vmatprep.subr.mxu0 0.0
        %v2621 = vand.u32 %v2091, 4294901760
        %2622 = vmatpush1.msra.mxu0 %v2621
        %2623 = vmatprep.subr.mxu0 0.0
        %v2624 = vand.u32 %v2092, 4294901760
        %2625 = vmatpush1.msra.mxu0 %v2624
        %2626 = vmatprep.subr.mxu0 0.0
        %2627 = vmatpush1.msra.mxu0 0.0
        %2628 = vmatprep.subr.mxu0 0.0
        %2629 = vmatpush1.msra.mxu0 0.0
        %2630 = vmatprep.subr.mxu0 0.0
        %2631 = vmatpush1.msra.mxu0 0.0
        %2632 = vmatprep.subr.mxu0 0.0
        %2633 = vmatpush1.msra.mxu0 0.0
        %2634 = vmatprep.subr.mxu0 0.0
        %2635 = vmatpush1.msra.mxu0 0.0
        %2636 = vmatprep.subr.mxu0 0.0
        %2637 = vmatpush1.msra.mxu0 0.0
        %2638 = vmatprep.subr.mxu0 0.0
        %2639 = vmatpush1.msra.mxu0 0.0
        %2640 = vmatprep.subr.mxu0 0.0
        %2641 = vmatpush1.msra.mxu0 0.0
        %2642 = vmatprep.subr.mxu0 0.0
        %2643 = vmatpush1.msra.mxu0 0.0
        %2644 = vmatprep.subr.mxu0 0.0
        %2645 = vmatpush1.msra.mxu0 0.0
        %2646 = vmatprep.subr.mxu0 0.0
        %2647 = vmatpush1.msra.mxu0 0.0
        %2648 = vmatprep.subr.mxu0 0.0
        %2649 = vmatpush1.msra.mxu0 0.0
        %2650 = vmatprep.subr.mxu0 0.0
        %2651 = vmatpush1.msra.mxu0 0.0
        %2652 = vmatprep.subr.mxu0 0.0
        %2653 = vmatpush1.msra.mxu0 0.0
        %2654 = vmatprep.subr.mxu0 0.0
        %2655 = vmatpush1.msra.mxu0 0.0
        %2656 = vmatprep.subr.mxu0 0.0
        %2657 = vmatpush1.msra.mxu0 0.0
        %2658 = vmatprep.subr.mxu0 0.0
        %2659 = vmatpush1.msra.mxu0 0.0
        %2660 = vmatprep.subr.mxu0 0.0
        %2661 = vmatpush1.msra.mxu0 0.0
        %2662 = vmatprep.subr.mxu0 0.0
        %2663 = vmatpush1.msra.mxu0 0.0
        %2664 = vmatprep.subr.mxu0 0.0
        %2665 = vmatpush1.msra.mxu0 0.0
        %2666 = vmatprep.subr.mxu0 0.0
        %2667 = vmatpush1.msra.mxu0 0.0
        %2668 = vmatprep.subr.mxu0 0.0
        %2669 = vmatpush1.msra.mxu0 0.0
        %2670 = vmatprep.subr.mxu0 0.0
        %2671 = vmatpush1.msra.mxu0 0.0
        %2672 = vmatprep.subr.mxu0 0.0
        %2673 = vmatpush1.msra.mxu0 0.0
        %2674 = vmatprep.subr.mxu0 0.0
        %2675 = vmatpush1.msra.mxu0 0.0
        %2676 = vmatprep.subr.mxu0 0.0
        %2677 = vmatpush1.msra.mxu0 0.0
        %2678 = vmatprep.subr.mxu0 0.0
        %2679 = vmatpush1.msra.mxu0 0.0
        %2680 = vmatprep.subr.mxu0 0.0
        %2681 = vmatpush1.msra.mxu0 0.0
        %2682 = vmatprep.mubr.f32.mxu0 0.0
        %v2683 = vand.u32 %v186, 4294901760
        %2684 = vmatmul.mubr.f32.gmra.mrb[0].mxu0 %v2683
        %v2685 = vpop.f32.mrb[0].mxu0
        %v2686 = vadd.f32 %v2593, %v2685
        %v2687 = vpop.f32.mrb[0].mxu0
        %2688 = vmatprep.mubr.f32.mxu0 0.0
        %v2689 = vand.u32 %v189, 4294901760
        %2690 = vmatmul.mubr.f32.gmra.mrb[0].mxu0 %v2689
        %v2691 = vpop.f32.mrb[0].mxu0
        %v2692 = vadd.f32 %v2599, %v2691
        %v2693 = vpop.f32.mrb[0].mxu0
        %2694 = vmatprep.mubr.f32.mxu0 0.0
        %v2695 = vand.u32 %v192, 4294901760
        %2696 = vmatmul.mubr.f32.gmra.mrb[0].mxu0 %v2695
        %v2697 = vpop.f32.mrb[0].mxu0
        %v2698 = vadd.f32 %v2605, %v2697
        %v2699 = vpop.f32.mrb[0].mxu0
        %2700 = vmatprep.mubr.f32.mxu0 0.0
        %v2701 = vand.u32 %v195, 4294901760
        %2702 = vmatmul.mubr.f32.gmra.mrb[0].mxu0 %v2701
        %v2703 = vpop.f32.mrb[0].mxu0
        %v2704 = vadd.f32 %v2611, %v2703
        %v2705 = vpop.f32.mrb[0].mxu0
        %2706 = vdwg.mxu0
        %s2707 = scalar_lea.vmem %s159, 96
        %2708 = vst.msk [vmem:[%s2707] sm:$0xff] %vm811, %v2686
        %2709 = vst.msk [vmem:[%s2707 + $0x8] sm:$0xff] %vm811, %v2692
        %2710 = vst.msk [vmem:[%s2707 + $0x10] sm:$0xff] %vm811, %v2698
        %2711 = vst.msk [vmem:[%s2707 + $0x18] sm:$0xff] %vm811, %v2704
        %p2712 = scmp.lt.s32.totalorder %s19, 1
        %s2713 = scalar_select %p2712, %s19, 1
        %p2714 = scmp.lt.s32.totalorder %s20, 0
        %s2715 = scalar_select %p2714, %s20, 0
        %s2716 = smul.addr %s2713, 16
        %s2717 = sadd.s32 %s2715, %s2716
        %s2718 = smul.addr %s2717, 8
        %s2719 = scalar_lea.vmem %s1, %s2718
        // Predicated region
        $region29: #{tpu_custom_call.1} parent=23 // pred_check
          %p2720 = pneg %p75
        $region30: #{tpu_custom_call.1} parent=23 // pred_check_branch
          %2722 = sbr.rel (%p2720) target = $region32
        $region31: #{tpu_custom_call.1} parent=23 // pred_region
          _
        $region32: #{tpu_custom_call.1} parent=23 // pred_fallthru
          _
      $region24: #{tpu_custom_call.1} parent=5 // pred_fallthru
        _
      %p2723 = scmp.le.s32.totalorder 2, %s10
      // Predicated region
      $region33: #{tpu_custom_call.1} parent=5 // pred_check
        %p2724 = pneg %p2723
      $region34: #{tpu_custom_call.1} parent=5 // pred_check_branch
        %2726 = sbr.rel (%p2724) target = $region36
      $region35: #{tpu_custom_call.1} parent=5 // pred_region
        %s2727 = ssub.s32 %s10, 2
        // Predicated region
        $region37: #{tpu_custom_call.1} parent=35 // pred_check
          %p2728 = pneg %p81
        $region38: #{tpu_custom_call.1} parent=35 // pred_check_branch
          %2730 = sbr.rel (%p2728) target = $region40
        $region39: #{tpu_custom_call.1} parent=35 // pred_region
          %p2731 = scmp.lt.s32.totalorder %s21, 1
          %s2732 = scalar_select %p2731, %s21, 1
          %p2733 = scmp.lt.s32.totalorder %s22, 0
          %s2734 = scalar_select %p2733, %s22, 0
          %s2735 = smul.addr %s2732, 16
          %s2736 = sadd.s32 %s2734, %s2735
          %s2737 = smul.addr %s2736, 8
          %s2738 = scalar_lea.vmem %s1, %s2737
        $region40: #{tpu_custom_call.1} parent=35 // pred_fallthru
          _
      $region36: #{tpu_custom_call.1} parent=5 // pred_fallthru
        _
    $region6: #{tpu_custom_call.1} parent=1 // loop_footer
      %s14 = sadd.s32 1, %s10
    $region7: #{tpu_custom_call.1} parent=1 // loop_footer_branch
      %9 = sbr.rel target = $region3
    $region8: #{tpu_custom_call.1} parent=1 // loop_exit
      _
    %2739 = vsyncpa [#allocation3], 1
    %s2740 = scalar_lea.sflag [#allocation3], 1
    %2741 = vsyncpa %s2740, 1

</llo_original>
